<compile_context>
chip_gen: v7x
topology: tpu7x:2x2x1
jax: 0.10.0
libtpu: 0.0.40
codegen_flags: <defaults>
</compile_context>

<pallas_src>
import jax
import jax.numpy as jnp
from jax import lax
from jax.experimental import pallas as pl
from jax.experimental.pallas import tpu as pltpu


def _round_up(x, m):
    return ((x + m - 1) // m) * m


def _ensemble_dynamics_kernel(
    s_ref, a_ref,               # [E, TB, S], [E, TB, A]   (f32 activations)
    w0s_ref, w0a_ref, b0_ref,   # [E, S, H0], [E, A, H0], [E, 1, H0]
    w1_ref, b1_ref,             # [E, H0, H1], [E, 1, H1]
    w2_ref, b2_ref,             # [E, H1, D_out], [E, 1, D_out]
    bounds_ref,                 # [3, D_out]: rows = (max_logvar, min_logvar, logvar-mask)
    out_ref,                    # [E, TB, D_out]  fused heads
):
    n_ens, tb, _ = s_ref.shape
    d_out = out_ref.shape[-1]
    mm_dtype = w1_ref.dtype     # bf16 or f32 matmul operands; accumulation is always f32

    # Hoist the [1, D_out] -> [TB, D_out] broadcasts out of the ensemble loop
    # (JAX does not CSE broadcast_in_dim).
    max_full = jnp.broadcast_to(bounds_ref[0:1, :], (tb, d_out))
    min_full = jnp.broadcast_to(bounds_ref[1:2, :], (tb, d_out))
    lv_mask = jnp.broadcast_to(bounds_ref[2:3, :], (tb, d_out))

    def body(e, carry):
        # Layer 0: states @ w0[:S] + actions @ w0[S:]  (avoids concat(state, action)).
        h = (
            jnp.dot(s_ref[e].astype(mm_dtype), w0s_ref[e],
                    preferred_element_type=jnp.float32)
            + jnp.dot(a_ref[e].astype(mm_dtype), w0a_ref[e],
                      preferred_element_type=jnp.float32)
            + b0_ref[e]
        )
        h = h * jax.nn.sigmoid(h)                                     # swish (f32)
        h = jnp.dot(h.astype(mm_dtype), w1_ref[e],
                    preferred_element_type=jnp.float32) + b1_ref[e]
        h = h * jax.nn.sigmoid(h)                                     # swish (f32)
        out = jnp.dot(h.astype(mm_dtype), w2_ref[e],
                      preferred_element_type=jnp.float32) + b2_ref[e]

        # Soft clamp applied only to logvar columns (mean columns pass through):
        #   lv = max - softplus(max - lv);  lv = min + softplus(lv - min)
        clamped = max_full - jax.nn.softplus(max_full - out)
        clamped = min_full + jax.nn.softplus(clamped - min_full)
        out_ref[e] = jnp.where(lv_mask > 0.0, clamped, out).astype(out_ref.dtype)
        return carry

    # fori_loop (not a Python unroll) bounds live ranges over the ensemble axis.
    lax.fori_loop(0, n_ens, body, 0)


def parallel_ensemble_dynamics_forward(
    states, actions, params, *, batch_tile=2048, use_bf16=False, out_dtype=None
):
    """Pallas forward. states [E,B,S], actions [E,B,A] -> dict of [E,B,S]/[E,B,R].

    use_bf16=True stores weights / matmul operands / the fused output in bf16
    (f32 accumulation kept) — the v6e/v7x MXU + HBM-writeback optimization.
    """
    E, B, S = states.shape
    A = actions.shape[-1]
    R = params["max_reward_logvar"].shape[-1]
    H0 = params["w0"].shape[-1]
    H1 = params["w1"].shape[-1]
    D_out = 2 * S + 2 * R

    w_dtype = jnp.bfloat16 if use_bf16 else jnp.float32
    if out_dtype is None:
        out_dtype = jnp.bfloat16 if use_bf16 else jnp.float32

    # Split first-layer weights so the kernel never needs concat(state, action).
    w0_s = params["w0"][:, :S, :].astype(w_dtype)
    w0_a = params["w0"][:, S:, :].astype(w_dtype)
    w1 = params["w1"].astype(w_dtype)
    w2 = params["w2"].astype(w_dtype)
    b0 = params["b0"].astype(jnp.float32)
    b1 = params["b1"].astype(jnp.float32)
    b2 = params["b2"].astype(jnp.float32)

    # Pack logvar clamp bounds + logvar-column mask into one [3, D_out] f32 tile.
    # Output column order: [ds_mean(S) | ds_logvar(S) | r_mean(R) | r_logvar(R)].
    z_s = jnp.zeros((1, S), jnp.float32)
    z_r = jnp.zeros((1, R), jnp.float32)
    max_full = jnp.concatenate(
        [z_s, params["max_diff_state_logvar"].astype(jnp.float32),
         z_r, params["max_reward_logvar"].astype(jnp.float32)], axis=-1)
    min_full = jnp.concatenate(
        [z_s, params["min_diff_state_logvar"].astype(jnp.float32),
         z_r, params["min_reward_logvar"].astype(jnp.float32)], axis=-1)
    lv_mask = jnp.concatenate(
        [z_s, jnp.ones((1, S), jnp.float32), z_r, jnp.ones((1, R), jnp.float32)], axis=-1)
    bounds = jnp.concatenate([max_full, min_full, lv_mask], axis=0)       # [3, D_out]

    # --- batch tiling -------------------------------------------------------
    # Tiny batches: one tile.  Otherwise split into >=2 tiles so the "parallel"
    # batch axis can shard across v7x's two TensorCores, capped at batch_tile.
    # (Re-derive batch_tile for v7x's 64 MiB VMEM; default targets v5e/v6e.)
    if B <= 128:
        TB = B
    elif B <= batch_tile:
        TB = _round_up(pl.cdiv(B, 2), 8)
    else:
        TB = batch_tile
    B_pad = _round_up(B, TB)
    if B_pad != B:                         # ragged last tile -> zero-pad, slice after
        pad = B_pad - B
        states = jnp.pad(states, ((0, 0), (0, pad), (0, 0)))
        actions = jnp.pad(actions, ((0, 0), (0, pad), (0, 0)))
    grid = (B_pad // TB,)

    # --- explicit VMEM budget -----------------------------------------------
    w_bytes = jnp.dtype(w_dtype).itemsize
    o_bytes = jnp.dtype(out_dtype).itemsize
    w_elems = E * (S * H0 + A * H0 + H0 * H1 + H1 * D_out)
    b_elems = E * (H0 + H1 + D_out)
    est = (
        2 * E * TB * (S + A) * 4                    # double-buffered activation inputs (f32)
        + 2 * E * TB * D_out * o_bytes              # double-buffered fused output
        + 2 * (w_elems * w_bytes + b_elems * 4)     # weights / biases (<=2 buffers)
        + 4 * TB * max(H0, H1, D_out) * 4           # live per-member intermediates
        + 3 * TB * D_out * 4                        # hoisted clamp-bound broadcasts
        + (1 << 20)                                 # slack
    )
    # Raise v5e's 16 MiB scoped default; stay well under v7x's 64 MiB physical.
    vmem_limit = int(min(48 * (1 << 20), max(32 * (1 << 20), est)))

    def act_spec(feat):
        return pl.BlockSpec((E, TB, feat), lambda b: (0, b, 0))

    def call(single_buffer_weights):
        wkw = ({"pipeline_mode": pl.Buffered(1)} if single_buffer_weights else {})

        def wgt_spec(fi, fo):
            # Constant index_map -> fetched once, resident across all batch tiles.
            return pl.BlockSpec((E, fi, fo), lambda b: (0, 0, 0), **wkw)

        in_specs = [
            act_spec(S), act_spec(A),                              # states, actions
            wgt_spec(S, H0), wgt_spec(A, H0), wgt_spec(1, H0),     # w0_s, w0_a, b0
            wgt_spec(H0, H1), wgt_spec(1, H1),                     # w1, b1
            wgt_spec(H1, D_out), wgt_spec(1, D_out),               # w2, b2
            pl.BlockSpec((3, D_out), lambda b: (0, 0), **wkw),     # packed bounds/mask
        ]
        out_specs = pl.BlockSpec((E, TB, D_out), lambda b: (0, b, 0))

        return pl.pallas_call(
            _ensemble_dynamics_kernel,
            out_shape=jax.ShapeDtypeStruct((E, B_pad, D_out), out_dtype),
            grid_spec=pltpu.PrefetchScalarGridSpec(
                num_scalar_prefetch=0,
                grid=grid,
                in_specs=in_specs,
                out_specs=out_specs,
            ),
            compiler_params=pltpu.CompilerParams(
                dimension_semantics=("parallel",),   # batch tiles are independent
                vmem_limit_bytes=vmem_limit,
            ),
        )(states, actions, w0_s, w0_a, b0, w1, b1, w2, b2, bounds)

    try:
        out = call(single_buffer_weights=True)       # halve weight-side VMEM
    except Exception:
        # pl.Buffered(1) not supported on this jax version -> default double-buffering.
        out = call(single_buffer_weights=False)

    out = out[:, :B]                                 # drop ragged-batch padding
    return {
        "diff_state_means": out[..., :S],
        "diff_state_logvars": out[..., S:2 * S],
        "reward_means": out[..., 2 * S:2 * S + R],
        "reward_logvars": out[..., 2 * S + R:],
    }


def reference_forward(states, actions, params):
    """Pure-JAX reference (mirrors the PyTorch forward semantics, f32)."""
    S = states.shape[-1]
    R = params["max_reward_logvar"].shape[-1]
    x = jnp.concatenate([states, actions], axis=-1)
    h = jnp.einsum("ebi,eio->ebo", x, params["w0"]) + params["b0"]
    h = h * jax.nn.sigmoid(h)
    h = jnp.einsum("ebi,eio->ebo", h, params["w1"]) + params["b1"]
    h = h * jax.nn.sigmoid(h)
    out = jnp.einsum("ebi,eio->ebo", h, params["w2"]) + params["b2"]
    ds_mean, ds_lv = out[..., :S], out[..., S:2 * S]
    r_mean, r_lv = out[..., 2 * S:2 * S + R], out[..., 2 * S + R:]
    max_ds, min_ds = params["max_diff_state_logvar"], params["min_diff_state_logvar"]
    max_r, min_r = params["max_reward_logvar"], params["min_reward_logvar"]
    ds_lv = max_ds - jax.nn.softplus(max_ds - ds_lv)
    ds_lv = min_ds + jax.nn.softplus(ds_lv - min_ds)
    r_lv = max_r - jax.nn.softplus(max_r - r_lv)
    r_lv = min_r + jax.nn.softplus(r_lv - min_r)
    return {
        "diff_state_means": ds_mean,
        "diff_state_logvars": ds_lv,
        "reward_means": r_mean,
        "reward_logvars": r_lv,
    }


def init_params(key, state_dim, action_dim, reward_dim, hidden_dims, ensemble_size):
    assert len(hidden_dims) == 2, "this script fixes two hidden layers"
    D_in = state_dim + action_dim
    H0, H1 = hidden_dims
    D_out = 2 * state_dim + 2 * reward_dim
    ks = jax.random.split(key, 6)

    def lin(k, e, fi, fo):
        return jax.random.normal(k, (e, fi, fo), jnp.float32) / jnp.sqrt(jnp.float32(fi))

    return {
        "w0": lin(ks[0], ensemble_size, D_in, H0),
        "b0": jnp.zeros((ensemble_size, 1, H0), jnp.float32),
        "w1": lin(ks[1], ensemble_size, H0, H1),
        "b1": jnp.zeros((ensemble_size, 1, H1), jnp.float32),
        "w2": lin(ks[2], ensemble_size, H1, D_out),
        "b2": 0.01 * jax.random.normal(ks[3], (ensemble_size, 1, D_out), jnp.float32),
        # nn.Parameter(torch.ones([1, state_dim]) / 2.0), etc.
        "max_diff_state_logvar": jnp.ones((1, state_dim), jnp.float32) / 2.0,
        "min_diff_state_logvar": -jnp.ones((1, state_dim), jnp.float32) * 10.0,
        "max_reward_logvar": jnp.ones((1, reward_dim), jnp.float32) / 2.0,
        "min_reward_logvar": -jnp.ones((1, reward_dim), jnp.float32) * 10.0,
    }


# TODO(synk): predict() (elite-index gather + Normal sampling), compute_l2_loss and
# snapshot bookkeeping are host-side/training utilities, not part of the forward hot
# path, and are left out of the kernel.

if __name__ == "__main__":
    state_dim, action_dim, reward_dim = 8, 3, 1
    hidden_dims = [32, 32]
    ensemble_size = 5

    key = jax.random.PRNGKey(0)
    k_par = jax.random.fold_in(key, 0)
    params = init_params(k_par, state_dim, action_dim, reward_dim, hidden_dims, ensemble_size)

    def run_case(batch, use_bf16, atol, rtol):
        kk = jax.random.fold_in(key, 100 * batch + int(use_bf16))
        ks, ka = jax.random.split(kk)
        states = jax.random.normal(ks, (ensemble_size, batch, state_dim), jnp.float32)
        actions = jax.random.normal(ka, (ensemble_size, batch, action_dim), jnp.float32)
        out = parallel_ensemble_dynamics_forward(states, actions, params, use_bf16=use_bf16)
        out = jax.tree_util.tree_map(jax.block_until_ready, out)
        ref = reference_forward(states, actions, params)
        for name in ("diff_state_means", "diff_state_logvars",
                     "reward_means", "reward_logvars"):
            assert out[name].shape == ref[name].shape, name
            assert jnp.allclose(out[name].astype(jnp.float32), ref[name],
                                atol=atol, rtol=rtol), name

    # f32 path, single batch tile.
    run_case(batch=8, use_bf16=False, atol=1e-4, rtol=1e-4)
    # f32 path, ragged multi-tile batch (grid of 2 "parallel" steps, padded last tile).
    run_case(batch=300, use_bf16=False, atol=1e-4, rtol=1e-4)
    # bf16 matmul operands + bf16 output (f32 accumulation) -> looser tolerance.
    run_case(batch=8, use_bf16=True, atol=1e-1, rtol=1e-1)

    print("KERNEL_OK")
</pallas_src>

<mosaic_0001>
module attributes {stable_mosaic.version = 11 : i64} {
  func.func @_ensemble_dynamics_kernel(%arg0: i32, %arg1: memref<5x8x8xf32, #tpu.memory_space<vmem>>, %arg2: memref<5x8x3xf32, #tpu.memory_space<vmem>>, %arg3: memref<5x8x32xf32, #tpu.memory_space<vmem>>, %arg4: memref<5x3x32xf32, #tpu.memory_space<vmem>>, %arg5: memref<5x1x32xf32, #tpu.memory_space<vmem>>, %arg6: memref<5x32x32xf32, #tpu.memory_space<vmem>>, %arg7: memref<5x1x32xf32, #tpu.memory_space<vmem>>, %arg8: memref<5x32x18xf32, #tpu.memory_space<vmem>>, %arg9: memref<5x1x18xf32, #tpu.memory_space<vmem>>, %arg10: memref<3x18xf32, #tpu.memory_space<vmem>>, %arg11: memref<5x8x18xf32, #tpu.memory_space<vmem>>) attributes {dimension_semantics = [#tpu.dimension_semantics<parallel>], iteration_bounds = array<i64: 1>, scalar_prefetch = 0 : i64, scratch_operands = 0 : i64, tpu.core_type = #tpu.core_type<tc>, window_params = [{transform_indices = @transform_0, window_bounds = array<i64: 5, 8, 8>}, {transform_indices = @transform_1, window_bounds = array<i64: 5, 8, 3>}, {pipeline_mode = #tpu.pipeline_mode<synchronous>, transform_indices = @transform_2, window_bounds = array<i64: 5, 8, 32>}, {pipeline_mode = #tpu.pipeline_mode<synchronous>, transform_indices = @transform_3, window_bounds = array<i64: 5, 3, 32>}, {pipeline_mode = #tpu.pipeline_mode<synchronous>, transform_indices = @transform_4, window_bounds = array<i64: 5, 1, 32>}, {pipeline_mode = #tpu.pipeline_mode<synchronous>, transform_indices = @transform_5, window_bounds = array<i64: 5, 32, 32>}, {pipeline_mode = #tpu.pipeline_mode<synchronous>, transform_indices = @transform_6, window_bounds = array<i64: 5, 1, 32>}, {pipeline_mode = #tpu.pipeline_mode<synchronous>, transform_indices = @transform_7, window_bounds = array<i64: 5, 32, 18>}, {pipeline_mode = #tpu.pipeline_mode<synchronous>, transform_indices = @transform_8, window_bounds = array<i64: 5, 1, 18>}, {pipeline_mode = #tpu.pipeline_mode<synchronous>, transform_indices = @transform_9, window_bounds = array<i64: 3, 18>}, {transform_indices = @transform_10, window_bounds = array<i64: 5, 8, 18>}]} {
    %c0 = arith.constant 0 : index
    %c0_0 = arith.constant 0 : index
    %0 = vector.load %arg10[%c0, %c0_0] : memref<3x18xf32, #tpu.memory_space<vmem>>, vector<1x18xf32>
    %1 = vector.shape_cast %0 : vector<1x18xf32> to vector<1x18xf32>
    %2 = vector.broadcast %1 : vector<1x18xf32> to vector<8x18xf32>
    %c1 = arith.constant 1 : index
    %c0_1 = arith.constant 0 : index
    %3 = vector.load %arg10[%c1, %c0_1] : memref<3x18xf32, #tpu.memory_space<vmem>>, vector<1x18xf32>
    %4 = vector.shape_cast %3 : vector<1x18xf32> to vector<1x18xf32>
    %5 = vector.broadcast %4 : vector<1x18xf32> to vector<8x18xf32>
    %c2 = arith.constant 2 : index
    %c0_2 = arith.constant 0 : index
    %6 = vector.load %arg10[%c2, %c0_2] : memref<3x18xf32, #tpu.memory_space<vmem>>, vector<1x18xf32>
    %7 = vector.shape_cast %6 : vector<1x18xf32> to vector<1x18xf32>
    %8 = vector.broadcast %7 : vector<1x18xf32> to vector<8x18xf32>
    %c0_i32 = arith.constant 0 : i32
    %c5_i32 = arith.constant 5 : i32
    %9 = arith.addi %c0_i32, %c5_i32 : i32
    %c1_i32 = arith.constant 1 : i32
    scf.for %arg12 = %c0_i32 to %9 step %c1_i32  : i32 {
      %10 = arith.index_cast %arg12 : i32 to index
      %c0_4 = arith.constant 0 : index
      %c0_5 = arith.constant 0 : index
      %11 = vector.load %arg1[%10, %c0_4, %c0_5] : memref<5x8x8xf32, #tpu.memory_space<vmem>>, vector<1x8x8xf32>
      %12 = vector.shape_cast %11 : vector<1x8x8xf32> to vector<8x8xf32>
      %13 = arith.index_cast %arg12 : i32 to index
      %c0_6 = arith.constant 0 : index
      %c0_7 = arith.constant 0 : index
      %14 = vector.load %arg3[%13, %c0_6, %c0_7] : memref<5x8x32xf32, #tpu.memory_space<vmem>>, vector<1x8x32xf32>
      %15 = vector.shape_cast %14 : vector<1x8x32xf32> to vector<8x32xf32>
      %cst = arith.constant dense<0.000000e+00> : vector<8x32xf32>
      %16 = tpu.matmul %12, %15, %cst {dimension_numbers = #tpu.dot_dimension_numbers<[1], [0], [0], [1], [0, 0, 1, 1], [], []>} : vector<8x8xf32>, vector<8x32xf32>, vector<8x32xf32> -> vector<8x32xf32>
      %17 = arith.index_cast %arg12 : i32 to index
      %c0_8 = arith.constant 0 : index
      %c0_9 = arith.constant 0 : index
      %18 = vector.load %arg2[%17, %c0_8, %c0_9] : memref<5x8x3xf32, #tpu.memory_space<vmem>>, vector<1x8x3xf32>
      %19 = vector.shape_cast %18 : vector<1x8x3xf32> to vector<8x3xf32>
      %20 = arith.index_cast %arg12 : i32 to index
      %c0_10 = arith.constant 0 : index
      %c0_11 = arith.constant 0 : index
      %21 = vector.load %arg4[%20, %c0_10, %c0_11] : memref<5x3x32xf32, #tpu.memory_space<vmem>>, vector<1x3x32xf32>
      %22 = vector.shape_cast %21 : vector<1x3x32xf32> to vector<3x32xf32>
      %cst_12 = arith.constant dense<0.000000e+00> : vector<8x32xf32>
      %23 = tpu.matmul %19, %22, %cst_12 {dimension_numbers = #tpu.dot_dimension_numbers<[1], [0], [0], [1], [0, 0, 1, 1], [], []>} : vector<8x3xf32>, vector<3x32xf32>, vector<8x32xf32> -> vector<8x32xf32>
      %24 = arith.addf %16, %23 : vector<8x32xf32>
      %25 = arith.index_cast %arg12 : i32 to index
      %c0_13 = arith.constant 0 : index
      %c0_14 = arith.constant 0 : index
      %26 = vector.load %arg5[%25, %c0_13, %c0_14] : memref<5x1x32xf32, #tpu.memory_space<vmem>>, vector<1x1x32xf32>
      %27 = vector.shape_cast %26 : vector<1x1x32xf32> to vector<1x32xf32>
      %28 = vector.broadcast %27 : vector<1x32xf32> to vector<8x32xf32>
      %29 = arith.addf %24, %28 : vector<8x32xf32>
      %30 = arith.negf %29 : vector<8x32xf32>
      %31 = math.exp %30 : vector<8x32xf32>
      %cst_15 = arith.constant 1.000000e+00 : f32
      %32 = vector.broadcast %cst_15 : f32 to vector<8x32xf32>
      %33 = arith.addf %32, %31 : vector<8x32xf32>
      %34 = arith.divf %32, %33 : vector<8x32xf32>
      %35 = arith.mulf %29, %34 : vector<8x32xf32>
      %36 = arith.index_cast %arg12 : i32 to index
      %c0_16 = arith.constant 0 : index
      %c0_17 = arith.constant 0 : index
      %37 = vector.load %arg6[%36, %c0_16, %c0_17] : memref<5x32x32xf32, #tpu.memory_space<vmem>>, vector<1x32x32xf32>
      %38 = vector.shape_cast %37 : vector<1x32x32xf32> to vector<32x32xf32>
      %cst_18 = arith.constant dense<0.000000e+00> : vector<8x32xf32>
      %39 = tpu.matmul %35, %38, %cst_18 {dimension_numbers = #tpu.dot_dimension_numbers<[1], [0], [0], [1], [0, 0, 1, 1], [], []>} : vector<8x32xf32>, vector<32x32xf32>, vector<8x32xf32> -> vector<8x32xf32>
      %40 = arith.index_cast %arg12 : i32 to index
      %c0_19 = arith.constant 0 : index
      %c0_20 = arith.constant 0 : index
      %41 = vector.load %arg7[%40, %c0_19, %c0_20] : memref<5x1x32xf32, #tpu.memory_space<vmem>>, vector<1x1x32xf32>
      %42 = vector.shape_cast %41 : vector<1x1x32xf32> to vector<1x32xf32>
      %43 = vector.broadcast %42 : vector<1x32xf32> to vector<8x32xf32>
      %44 = arith.addf %39, %43 : vector<8x32xf32>
      %45 = arith.negf %44 : vector<8x32xf32>
      %46 = math.exp %45 : vector<8x32xf32>
      %cst_21 = arith.constant 1.000000e+00 : f32
      %47 = vector.broadcast %cst_21 : f32 to vector<8x32xf32>
      %48 = arith.addf %47, %46 : vector<8x32xf32>
      %49 = arith.divf %47, %48 : vector<8x32xf32>
      %50 = arith.mulf %44, %49 : vector<8x32xf32>
      %51 = arith.index_cast %arg12 : i32 to index
      %c0_22 = arith.constant 0 : index
      %c0_23 = arith.constant 0 : index
      %52 = vector.load %arg8[%51, %c0_22, %c0_23] : memref<5x32x18xf32, #tpu.memory_space<vmem>>, vector<1x32x18xf32>
      %53 = vector.shape_cast %52 : vector<1x32x18xf32> to vector<32x18xf32>
      %cst_24 = arith.constant dense<0.000000e+00> : vector<8x18xf32>
      %54 = tpu.matmul %50, %53, %cst_24 {dimension_numbers = #tpu.dot_dimension_numbers<[1], [0], [0], [1], [0, 0, 1, 1], [], []>} : vector<8x32xf32>, vector<32x18xf32>, vector<8x18xf32> -> vector<8x18xf32>
      %55 = arith.index_cast %arg12 : i32 to index
      %c0_25 = arith.constant 0 : index
      %c0_26 = arith.constant 0 : index
      %56 = vector.load %arg9[%55, %c0_25, %c0_26] : memref<5x1x18xf32, #tpu.memory_space<vmem>>, vector<1x1x18xf32>
      %57 = vector.shape_cast %56 : vector<1x1x18xf32> to vector<1x18xf32>
      %58 = vector.broadcast %57 : vector<1x18xf32> to vector<8x18xf32>
      %59 = arith.addf %54, %58 : vector<8x18xf32>
      %60 = arith.subf %2, %59 : vector<8x18xf32>
      %cst_27 = arith.constant 0.000000e+00 : f32
      %61 = vector.broadcast %cst_27 : f32 to vector<8x18xf32>
      %62 = arith.maximumf %60, %61 : vector<8x18xf32>
      %63 = vector.broadcast %cst_27 : f32 to vector<8x18xf32>
      %64 = arith.subf %60, %63 : vector<8x18xf32>
      %65 = arith.cmpf one, %64, %64 : vector<8x18xf32>
      %66 = vector.broadcast %cst_27 : f32 to vector<8x18xf32>
      %67 = arith.addf %60, %66 : vector<8x18xf32>
      %68 = math.absf %64 : vector<8x18xf32>
      %cst_28 = arith.constant 0.000000e+00 : f32
      %69 = vector.broadcast %cst_28 : f32 to vector<8x18xf32>
      %70 = arith.subf %69, %68 : vector<8x18xf32>
      %71 = math.exp %70 : vector<8x18xf32>
      %72 = math.log1p %71 : vector<8x18xf32>
      %73 = arith.addf %62, %72 : vector<8x18xf32>
      %74 = arith.select %65, %67, %73 : vector<8x18xi1>, vector<8x18xf32>
      %75 = arith.subf %2, %74 : vector<8x18xf32>
      %76 = arith.subf %75, %5 : vector<8x18xf32>
      %cst_29 = arith.constant 0.000000e+00 : f32
      %77 = vector.broadcast %cst_29 : f32 to vector<8x18xf32>
      %78 = arith.maximumf %76, %77 : vector<8x18xf32>
      %79 = vector.broadcast %cst_29 : f32 to vector<8x18xf32>
      %80 = arith.subf %76, %79 : vector<8x18xf32>
      %81 = arith.cmpf one, %80, %80 : vector<8x18xf32>
      %82 = vector.broadcast %cst_29 : f32 to vector<8x18xf32>
      %83 = arith.addf %76, %82 : vector<8x18xf32>
      %84 = math.absf %80 : vector<8x18xf32>
      %cst_30 = arith.constant 0.000000e+00 : f32
      %85 = vector.broadcast %cst_30 : f32 to vector<8x18xf32>
      %86 = arith.subf %85, %84 : vector<8x18xf32>
      %87 = math.exp %86 : vector<8x18xf32>
      %88 = math.log1p %87 : vector<8x18xf32>
      %89 = arith.addf %78, %88 : vector<8x18xf32>
      %90 = arith.select %81, %83, %89 : vector<8x18xi1>, vector<8x18xf32>
      %91 = arith.addf %5, %90 : vector<8x18xf32>
      %cst_31 = arith.constant 0.000000e+00 : f32
      %92 = vector.broadcast %cst_31 : f32 to vector<8x18xf32>
      %93 = arith.cmpf ogt, %8, %92 : vector<8x18xf32>
      %94 = arith.select %93, %91, %59 : vector<8x18xi1>, vector<8x18xf32>
      %95 = arith.index_cast %arg12 : i32 to index
      %c0_32 = arith.constant 0 : index
      %c0_33 = arith.constant 0 : index
      %96 = vector.load %arg11[%95, %c0_32, %c0_33] : memref<5x8x18xf32, #tpu.memory_space<vmem>>, vector<1x8x18xf32>
      %97 = vector.shape_cast %96 : vector<1x8x18xf32> to vector<8x18xf32>
      %98 = vector.shape_cast %94 : vector<8x18xf32> to vector<1x8x18xf32>
      tpu.vector_store %arg11[%95, %c0_32, %c0_33], %98 {strides = array<i32>} : memref<5x8x18xf32, #tpu.memory_space<vmem>>, vector<1x8x18xf32>,
    }
    %c5_i32_3 = arith.constant 5 : i32
    return
  }
  func.func @transform_0(%arg0: i32) -> (i32, i32, i32) {
    %c0_i32 = arith.constant 0 : i32
    %c0_i32_0 = arith.constant 0 : i32
    %c0_i32_1 = arith.constant 0 : i32
    return %c0_i32, %arg0, %c0_i32_0 : i32, i32, i32
  }
  func.func @transform_1(%arg0: i32) -> (i32, i32, i32) {
    %c0_i32 = arith.constant 0 : i32
    %c0_i32_0 = arith.constant 0 : i32
    %c0_i32_1 = arith.constant 0 : i32
    return %c0_i32, %arg0, %c0_i32_0 : i32, i32, i32
  }
  func.func @transform_2(%arg0: i32) -> (i32, i32, i32) {
    %c0_i32 = arith.constant 0 : i32
    %c0_i32_0 = arith.constant 0 : i32
    %c0_i32_1 = arith.constant 0 : i32
    %c0_i32_2 = arith.constant 0 : i32
    return %c0_i32, %c0_i32_0, %c0_i32_1 : i32, i32, i32
  }
  func.func @transform_3(%arg0: i32) -> (i32, i32, i32) {
    %c0_i32 = arith.constant 0 : i32
    %c0_i32_0 = arith.constant 0 : i32
    %c0_i32_1 = arith.constant 0 : i32
    %c0_i32_2 = arith.constant 0 : i32
    return %c0_i32, %c0_i32_0, %c0_i32_1 : i32, i32, i32
  }
  func.func @transform_4(%arg0: i32) -> (i32, i32, i32) {
    %c0_i32 = arith.constant 0 : i32
    %c0_i32_0 = arith.constant 0 : i32
    %c0_i32_1 = arith.constant 0 : i32
    %c0_i32_2 = arith.constant 0 : i32
    return %c0_i32, %c0_i32_0, %c0_i32_1 : i32, i32, i32
  }
  func.func @transform_5(%arg0: i32) -> (i32, i32, i32) {
    %c0_i32 = arith.constant 0 : i32
    %c0_i32_0 = arith.constant 0 : i32
    %c0_i32_1 = arith.constant 0 : i32
    %c0_i32_2 = arith.constant 0 : i32
    return %c0_i32, %c0_i32_0, %c0_i32_1 : i32, i32, i32
  }
  func.func @transform_6(%arg0: i32) -> (i32, i32, i32) {
    %c0_i32 = arith.constant 0 : i32
    %c0_i32_0 = arith.constant 0 : i32
    %c0_i32_1 = arith.constant 0 : i32
    %c0_i32_2 = arith.constant 0 : i32
    return %c0_i32, %c0_i32_0, %c0_i32_1 : i32, i32, i32
  }
  func.func @transform_7(%arg0: i32) -> (i32, i32, i32) {
    %c0_i32 = arith.constant 0 : i32
    %c0_i32_0 = arith.constant 0 : i32
    %c0_i32_1 = arith.constant 0 : i32
    %c0_i32_2 = arith.constant 0 : i32
    return %c0_i32, %c0_i32_0, %c0_i32_1 : i32, i32, i32
  }
  func.func @transform_8(%arg0: i32) -> (i32, i32, i32) {
    %c0_i32 = arith.constant 0 : i32
    %c0_i32_0 = arith.constant 0 : i32
    %c0_i32_1 = arith.constant 0 : i32
    %c0_i32_2 = arith.constant 0 : i32
    return %c0_i32, %c0_i32_0, %c0_i32_1 : i32, i32, i32
  }
  func.func @transform_9(%arg0: i32) -> (i32, i32) {
    %c0_i32 = arith.constant 0 : i32
    %c0_i32_0 = arith.constant 0 : i32
    %c0_i32_1 = arith.constant 0 : i32
    return %c0_i32, %c0_i32_0 : i32, i32
  }
  func.func @transform_10(%arg0: i32) -> (i32, i32, i32) {
    %c0_i32 = arith.constant 0 : i32
    %c0_i32_0 = arith.constant 0 : i32
    %c0_i32_1 = arith.constant 0 : i32
    return %c0_i32, %arg0, %c0_i32_0 : i32, i32, i32
  }
}

module attributes {stable_mosaic.version = 11 : i64} {
  func.func @_ensemble_dynamics_kernel(%arg0: i32, %arg1: memref<5x8x8xf32, #tpu.memory_space<vmem>>, %arg2: memref<5x8x3xf32, #tpu.memory_space<vmem>>, %arg3: memref<5x8x32xf32, #tpu.memory_space<vmem>>, %arg4: memref<5x3x32xf32, #tpu.memory_space<vmem>>, %arg5: memref<5x1x32xf32, #tpu.memory_space<vmem>>, %arg6: memref<5x32x32xf32, #tpu.memory_space<vmem>>, %arg7: memref<5x1x32xf32, #tpu.memory_space<vmem>>, %arg8: memref<5x32x18xf32, #tpu.memory_space<vmem>>, %arg9: memref<5x1x18xf32, #tpu.memory_space<vmem>>, %arg10: memref<3x18xf32, #tpu.memory_space<vmem>>, %arg11: memref<5x8x18xf32, #tpu.memory_space<vmem>>) attributes {dimension_semantics = [#tpu.dimension_semantics<parallel>], iteration_bounds = array<i64: 1>, scalar_prefetch = 0 : i64, scratch_operands = 0 : i64, tpu.core_type = #tpu.core_type<tc>, window_params = [{transform_indices = @transform_0, window_bounds = array<i64: 5, 8, 8>}, {transform_indices = @transform_1, window_bounds = array<i64: 5, 8, 3>}, {pipeline_mode = #tpu.pipeline_mode<synchronous>, transform_indices = @transform_2, window_bounds = array<i64: 5, 8, 32>}, {pipeline_mode = #tpu.pipeline_mode<synchronous>, transform_indices = @transform_3, window_bounds = array<i64: 5, 3, 32>}, {pipeline_mode = #tpu.pipeline_mode<synchronous>, transform_indices = @transform_4, window_bounds = array<i64: 5, 1, 32>}, {pipeline_mode = #tpu.pipeline_mode<synchronous>, transform_indices = @transform_5, window_bounds = array<i64: 5, 32, 32>}, {pipeline_mode = #tpu.pipeline_mode<synchronous>, transform_indices = @transform_6, window_bounds = array<i64: 5, 1, 32>}, {pipeline_mode = #tpu.pipeline_mode<synchronous>, transform_indices = @transform_7, window_bounds = array<i64: 5, 32, 18>}, {pipeline_mode = #tpu.pipeline_mode<synchronous>, transform_indices = @transform_8, window_bounds = array<i64: 5, 1, 18>}, {pipeline_mode = #tpu.pipeline_mode<synchronous>, transform_indices = @transform_9, window_bounds = array<i64: 3, 18>}, {transform_indices = @transform_10, window_bounds = array<i64: 5, 8, 18>}]} {
    %c0 = arith.constant 0 : index
    %c0_0 = arith.constant 0 : index
    %0 = vector.load %arg10[%c0, %c0_0] : memref<3x18xf32, #tpu.memory_space<vmem>>, vector<1x18xf32>
    %1 = vector.shape_cast %0 : vector<1x18xf32> to vector<1x18xf32>
    %2 = vector.broadcast %1 : vector<1x18xf32> to vector<8x18xf32>
    %c1 = arith.constant 1 : index
    %c0_1 = arith.constant 0 : index
    %3 = vector.load %arg10[%c1, %c0_1] : memref<3x18xf32, #tpu.memory_space<vmem>>, vector<1x18xf32>
    %4 = vector.shape_cast %3 : vector<1x18xf32> to vector<1x18xf32>
    %5 = vector.broadcast %4 : vector<1x18xf32> to vector<8x18xf32>
    %c2 = arith.constant 2 : index
    %c0_2 = arith.constant 0 : index
    %6 = vector.load %arg10[%c2, %c0_2] : memref<3x18xf32, #tpu.memory_space<vmem>>, vector<1x18xf32>
    %7 = vector.shape_cast %6 : vector<1x18xf32> to vector<1x18xf32>
    %8 = vector.broadcast %7 : vector<1x18xf32> to vector<8x18xf32>
    %c0_i32 = arith.constant 0 : i32
    %c5_i32 = arith.constant 5 : i32
    %9 = arith.addi %c0_i32, %c5_i32 : i32
    %c1_i32 = arith.constant 1 : i32
    scf.for %arg12 = %c0_i32 to %9 step %c1_i32  : i32 {
      %10 = arith.index_cast %arg12 : i32 to index
      %c0_4 = arith.constant 0 : index
      %c0_5 = arith.constant 0 : index
      %11 = vector.load %arg1[%10, %c0_4, %c0_5] : memref<5x8x8xf32, #tpu.memory_space<vmem>>, vector<1x8x8xf32>
      %12 = vector.shape_cast %11 : vector<1x8x8xf32> to vector<8x8xf32>
      %13 = arith.index_cast %arg12 : i32 to index
      %c0_6 = arith.constant 0 : index
      %c0_7 = arith.constant 0 : index
      %14 = vector.load %arg3[%13, %c0_6, %c0_7] : memref<5x8x32xf32, #tpu.memory_space<vmem>>, vector<1x8x32xf32>
      %15 = vector.shape_cast %14 : vector<1x8x32xf32> to vector<8x32xf32>
      %cst = arith.constant dense<0.000000e+00> : vector<8x32xf32>
      %16 = tpu.matmul %12, %15, %cst {dimension_numbers = #tpu.dot_dimension_numbers<[1], [0], [0], [1], [0, 0, 1, 1], [], []>} : vector<8x8xf32>, vector<8x32xf32>, vector<8x32xf32> -> vector<8x32xf32>
      %17 = arith.index_cast %arg12 : i32 to index
      %c0_8 = arith.constant 0 : index
      %c0_9 = arith.constant 0 : index
      %18 = vector.load %arg2[%17, %c0_8, %c0_9] : memref<5x8x3xf32, #tpu.memory_space<vmem>>, vector<1x8x3xf32>
      %19 = vector.shape_cast %18 : vector<1x8x3xf32> to vector<8x3xf32>
      %20 = arith.index_cast %arg12 : i32 to index
      %c0_10 = arith.constant 0 : index
      %c0_11 = arith.constant 0 : index
      %21 = vector.load %arg4[%20, %c0_10, %c0_11] : memref<5x3x32xf32, #tpu.memory_space<vmem>>, vector<1x3x32xf32>
      %22 = vector.shape_cast %21 : vector<1x3x32xf32> to vector<3x32xf32>
      %cst_12 = arith.constant dense<0.000000e+00> : vector<8x32xf32>
      %23 = tpu.matmul %19, %22, %cst_12 {dimension_numbers = #tpu.dot_dimension_numbers<[1], [0], [0], [1], [0, 0, 1, 1], [], []>} : vector<8x3xf32>, vector<3x32xf32>, vector<8x32xf32> -> vector<8x32xf32>
      %24 = arith.addf %16, %23 : vector<8x32xf32>
      %25 = arith.index_cast %arg12 : i32 to index
      %c0_13 = arith.constant 0 : index
      %c0_14 = arith.constant 0 : index
      %26 = vector.load %arg5[%25, %c0_13, %c0_14] : memref<5x1x32xf32, #tpu.memory_space<vmem>>, vector<1x1x32xf32>
      %27 = vector.shape_cast %26 : vector<1x1x32xf32> to vector<1x32xf32>
      %28 = vector.broadcast %27 : vector<1x32xf32> to vector<8x32xf32>
      %29 = arith.addf %24, %28 : vector<8x32xf32>
      %30 = arith.negf %29 : vector<8x32xf32>
      %31 = math.exp %30 : vector<8x32xf32>
      %cst_15 = arith.constant 1.000000e+00 : f32
      %32 = vector.broadcast %cst_15 : f32 to vector<8x32xf32>
      %33 = arith.addf %32, %31 : vector<8x32xf32>
      %34 = arith.divf %32, %33 : vector<8x32xf32>
      %35 = arith.mulf %29, %34 : vector<8x32xf32>
      %36 = arith.index_cast %arg12 : i32 to index
      %c0_16 = arith.constant 0 : index
      %c0_17 = arith.constant 0 : index
      %37 = vector.load %arg6[%36, %c0_16, %c0_17] : memref<5x32x32xf32, #tpu.memory_space<vmem>>, vector<1x32x32xf32>
      %38 = vector.shape_cast %37 : vector<1x32x32xf32> to vector<32x32xf32>
      %cst_18 = arith.constant dense<0.000000e+00> : vector<8x32xf32>
      %39 = tpu.matmul %35, %38, %cst_18 {dimension_numbers = #tpu.dot_dimension_numbers<[1], [0], [0], [1], [0, 0, 1, 1], [], []>} : vector<8x32xf32>, vector<32x32xf32>, vector<8x32xf32> -> vector<8x32xf32>
      %40 = arith.index_cast %arg12 : i32 to index
      %c0_19 = arith.constant 0 : index
      %c0_20 = arith.constant 0 : index
      %41 = vector.load %arg7[%40, %c0_19, %c0_20] : memref<5x1x32xf32, #tpu.memory_space<vmem>>, vector<1x1x32xf32>
      %42 = vector.shape_cast %41 : vector<1x1x32xf32> to vector<1x32xf32>
      %43 = vector.broadcast %42 : vector<1x32xf32> to vector<8x32xf32>
      %44 = arith.addf %39, %43 : vector<8x32xf32>
      %45 = arith.negf %44 : vector<8x32xf32>
      %46 = math.exp %45 : vector<8x32xf32>
      %cst_21 = arith.constant 1.000000e+00 : f32
      %47 = vector.broadcast %cst_21 : f32 to vector<8x32xf32>
      %48 = arith.addf %47, %46 : vector<8x32xf32>
      %49 = arith.divf %47, %48 : vector<8x32xf32>
      %50 = arith.mulf %44, %49 : vector<8x32xf32>
      %51 = arith.index_cast %arg12 : i32 to index
      %c0_22 = arith.constant 0 : index
      %c0_23 = arith.constant 0 : index
      %52 = vector.load %arg8[%51, %c0_22, %c0_23] : memref<5x32x18xf32, #tpu.memory_space<vmem>>, vector<1x32x18xf32>
      %53 = vector.shape_cast %52 : vector<1x32x18xf32> to vector<32x18xf32>
      %cst_24 = arith.constant dense<0.000000e+00> : vector<8x18xf32>
      %54 = tpu.matmul %50, %53, %cst_24 {dimension_numbers = #tpu.dot_dimension_numbers<[1], [0], [0], [1], [0, 0, 1, 1], [], []>} : vector<8x32xf32>, vector<32x18xf32>, vector<8x18xf32> -> vector<8x18xf32>
      %55 = arith.index_cast %arg12 : i32 to index
      %c0_25 = arith.constant 0 : index
      %c0_26 = arith.constant 0 : index
      %56 = vector.load %arg9[%55, %c0_25, %c0_26] : memref<5x1x18xf32, #tpu.memory_space<vmem>>, vector<1x1x18xf32>
      %57 = vector.shape_cast %56 : vector<1x1x18xf32> to vector<1x18xf32>
      %58 = vector.broadcast %57 : vector<1x18xf32> to vector<8x18xf32>
      %59 = arith.addf %54, %58 : vector<8x18xf32>
      %60 = arith.subf %2, %59 : vector<8x18xf32>
      %cst_27 = arith.constant 0.000000e+00 : f32
      %61 = vector.broadcast %cst_27 : f32 to vector<8x18xf32>
      %62 = arith.maximumf %60, %61 : vector<8x18xf32>
      %63 = vector.broadcast %cst_27 : f32 to vector<8x18xf32>
      %64 = arith.subf %60, %63 : vector<8x18xf32>
      %65 = arith.cmpf one, %64, %64 : vector<8x18xf32>
      %66 = vector.broadcast %cst_27 : f32 to vector<8x18xf32>
      %67 = arith.addf %60, %66 : vector<8x18xf32>
      %68 = math.absf %64 : vector<8x18xf32>
      %cst_28 = arith.constant 0.000000e+00 : f32
      %69 = vector.broadcast %cst_28 : f32 to vector<8x18xf32>
      %70 = arith.subf %69, %68 : vector<8x18xf32>
      %71 = math.exp %70 : vector<8x18xf32>
      %72 = math.log1p %71 : vector<8x18xf32>
      %73 = arith.addf %62, %72 : vector<8x18xf32>
      %74 = arith.select %65, %67, %73 : vector<8x18xi1>, vector<8x18xf32>
      %75 = arith.subf %2, %74 : vector<8x18xf32>
      %76 = arith.subf %75, %5 : vector<8x18xf32>
      %cst_29 = arith.constant 0.000000e+00 : f32
      %77 = vector.broadcast %cst_29 : f32 to vector<8x18xf32>
      %78 = arith.maximumf %76, %77 : vector<8x18xf32>
      %79 = vector.broadcast %cst_29 : f32 to vector<8x18xf32>
      %80 = arith.subf %76, %79 : vector<8x18xf32>
      %81 = arith.cmpf one, %80, %80 : vector<8x18xf32>
      %82 = vector.broadcast %cst_29 : f32 to vector<8x18xf32>
      %83 = arith.addf %76, %82 : vector<8x18xf32>
      %84 = math.absf %80 : vector<8x18xf32>
      %cst_30 = arith.constant 0.000000e+00 : f32
      %85 = vector.broadcast %cst_30 : f32 to vector<8x18xf32>
      %86 = arith.subf %85, %84 : vector<8x18xf32>
      %87 = math.exp %86 : vector<8x18xf32>
      %88 = math.log1p %87 : vector<8x18xf32>
      %89 = arith.addf %78, %88 : vector<8x18xf32>
      %90 = arith.select %81, %83, %89 : vector<8x18xi1>, vector<8x18xf32>
      %91 = arith.addf %5, %90 : vector<8x18xf32>
      %cst_31 = arith.constant 0.000000e+00 : f32
      %92 = vector.broadcast %cst_31 : f32 to vector<8x18xf32>
      %93 = arith.cmpf ogt, %8, %92 : vector<8x18xf32>
      %94 = arith.select %93, %91, %59 : vector<8x18xi1>, vector<8x18xf32>
      %95 = arith.index_cast %arg12 : i32 to index
      %c0_32 = arith.constant 0 : index
      %c0_33 = arith.constant 0 : index
      %96 = vector.load %arg11[%95, %c0_32, %c0_33] : memref<5x8x18xf32, #tpu.memory_space<vmem>>, vector<1x8x18xf32>
      %97 = vector.shape_cast %96 : vector<1x8x18xf32> to vector<8x18xf32>
      %98 = vector.shape_cast %94 : vector<8x18xf32> to vector<1x8x18xf32>
      tpu.vector_store %arg11[%95, %c0_32, %c0_33], %98 {strides = array<i32>} : memref<5x8x18xf32, #tpu.memory_space<vmem>>, vector<1x8x18xf32>,
    }
    %c5_i32_3 = arith.constant 5 : i32
    return
  }
  func.func @transform_0(%arg0: i32) -> (i32, i32, i32) {
    %c0_i32 = arith.constant 0 : i32
    %c0_i32_0 = arith.constant 0 : i32
    %c0_i32_1 = arith.constant 0 : i32
    return %c0_i32, %arg0, %c0_i32_0 : i32, i32, i32
  }
  func.func @transform_1(%arg0: i32) -> (i32, i32, i32) {
    %c0_i32 = arith.constant 0 : i32
    %c0_i32_0 = arith.constant 0 : i32
    %c0_i32_1 = arith.constant 0 : i32
    return %c0_i32, %arg0, %c0_i32_0 : i32, i32, i32
  }
  func.func @transform_2(%arg0: i32) -> (i32, i32, i32) {
    %c0_i32 = arith.constant 0 : i32
    %c0_i32_0 = arith.constant 0 : i32
    %c0_i32_1 = arith.constant 0 : i32
    %c0_i32_2 = arith.constant 0 : i32
    return %c0_i32, %c0_i32_0, %c0_i32_1 : i32, i32, i32
  }
  func.func @transform_3(%arg0: i32) -> (i32, i32, i32) {
    %c0_i32 = arith.constant 0 : i32
    %c0_i32_0 = arith.constant 0 : i32
    %c0_i32_1 = arith.constant 0 : i32
    %c0_i32_2 = arith.constant 0 : i32
    return %c0_i32, %c0_i32_0, %c0_i32_1 : i32, i32, i32
  }
  func.func @transform_4(%arg0: i32) -> (i32, i32, i32) {
    %c0_i32 = arith.constant 0 : i32
    %c0_i32_0 = arith.constant 0 : i32
    %c0_i32_1 = arith.constant 0 : i32
    %c0_i32_2 = arith.constant 0 : i32
    return %c0_i32, %c0_i32_0, %c0_i32_1 : i32, i32, i32
  }
  func.func @transform_5(%arg0: i32) -> (i32, i32, i32) {
    %c0_i32 = arith.constant 0 : i32
    %c0_i32_0 = arith.constant 0 : i32
    %c0_i32_1 = arith.constant 0 : i32
    %c0_i32_2 = arith.constant 0 : i32
    return %c0_i32, %c0_i32_0, %c0_i32_1 : i32, i32, i32
  }
  func.func @transform_6(%arg0: i32) -> (i32, i32, i32) {
    %c0_i32 = arith.constant 0 : i32
    %c0_i32_0 = arith.constant 0 : i32
    %c0_i32_1 = arith.constant 0 : i32
    %c0_i32_2 = arith.constant 0 : i32
    return %c0_i32, %c0_i32_0, %c0_i32_1 : i32, i32, i32
  }
  func.func @transform_7(%arg0: i32) -> (i32, i32, i32) {
    %c0_i32 = arith.constant 0 : i32
    %c0_i32_0 = arith.constant 0 : i32
    %c0_i32_1 = arith.constant 0 : i32
    %c0_i32_2 = arith.constant 0 : i32
    return %c0_i32, %c0_i32_0, %c0_i32_1 : i32, i32, i32
  }
  func.func @transform_8(%arg0: i32) -> (i32, i32, i32) {
    %c0_i32 = arith.constant 0 : i32
    %c0_i32_0 = arith.constant 0 : i32
    %c0_i32_1 = arith.constant 0 : i32
    %c0_i32_2 = arith.constant 0 : i32
    return %c0_i32, %c0_i32_0, %c0_i32_1 : i32, i32, i32
  }
  func.func @transform_9(%arg0: i32) -> (i32, i32) {
    %c0_i32 = arith.constant 0 : i32
    %c0_i32_0 = arith.constant 0 : i32
    %c0_i32_1 = arith.constant 0 : i32
    return %c0_i32, %c0_i32_0 : i32, i32
  }
  func.func @transform_10(%arg0: i32) -> (i32, i32, i32) {
    %c0_i32 = arith.constant 0 : i32
    %c0_i32_0 = arith.constant 0 : i32
    %c0_i32_1 = arith.constant 0 : i32
    return %c0_i32, %arg0, %c0_i32_0 : i32, i32, i32
  }
}

</mosaic_0001>

<llo_original>
// kernel: tpu_custom_call.1
$region0: #{tpu_custom_call.1}
  #allocation0 [shape = 'u32[]', space=smem, size = 0x4, offset = 0x4, fixed_abs, tag = 'smem constant byte address 0x4 - core index']
  #allocation1 [shape = 'u32[144,128]{1,0:T(1,128)}', space=vmem, size = 0x12000, scoped, tag = 'internal scratch']
  %s0 = inlined_call_operand.vmem [shape: f32[5,8,8], index: 0, kind: input, shape index: {}]
  %s1 = inlined_call_operand.vmem [shape: f32[5,8,3], index: 1, kind: input, shape index: {}]
  %s2 = inlined_call_operand.vmem [shape: f32[5,8,32], index: 2, kind: input, shape index: {}]
  %s3 = inlined_call_operand.vmem [shape: f32[5,3,32], index: 3, kind: input, shape index: {}]
  %s4 = inlined_call_operand.vmem [shape: f32[5,1,32], index: 4, kind: input, shape index: {}]
  %s5 = inlined_call_operand.vmem [shape: f32[5,32,32], index: 5, kind: input, shape index: {}]
  %s6 = inlined_call_operand.vmem [shape: f32[5,1,32], index: 6, kind: input, shape index: {}]
  %s7 = inlined_call_operand.vmem [shape: f32[5,32,18], index: 7, kind: input, shape index: {}]
  %s8 = inlined_call_operand.vmem [shape: f32[5,1,18], index: 8, kind: input, shape index: {}]
  %s9 = inlined_call_operand.vmem [shape: f32[3,18], index: 9, kind: input, shape index: {}]
  %s10 = inlined_call_operand.hbm [shape: f32[5,8,18], index: 10, kind: output, shape index: {}]
  %s11 = sld [smem:[#allocation0]]
  $region57: #{tpu_custom_call.1} parent=0
    _
  %s13 = ssub.s32 1, %s11
  %s14 = scalar_select 0, %s13, %s11
  $region1: #{tpu_custom_call.1} parent=0
    #allocation2 [shape = 'u8[20480]{0}', space=vmem, size = 0x5000, scoped, tag = 'output window, operand 0, single buffered']
    #allocation3 [shape = 's32[1]{0}', space=sflag, size = 0x4, scoped, tag = 'scoped memory for tpu_custom_call.1']
    %15 = vsyncpa [#allocation3], 0
    // Predicated region
    $region2: #{tpu_custom_call.1} parent=1 // pred_check
      _
    $region3: #{tpu_custom_call.1} parent=1 // pred_check_branch
      %17 = sbr.rel (0) target = $region5
    $region4: #{tpu_custom_call.1} parent=1 // pred_region
      _
    $region5: #{tpu_custom_call.1} parent=1 // pred_fallthru
      _
    // Predicated region
    $region6: #{tpu_custom_call.1} parent=1 // pred_check
      _
    $region7: #{tpu_custom_call.1} parent=1 // pred_check_branch
      %19 = sbr.rel (0) target = $region9
    $region8: #{tpu_custom_call.1} parent=1 // pred_region
      _
    $region9: #{tpu_custom_call.1} parent=1 // pred_fallthru
      _
    // Predicated region
    $region10: #{tpu_custom_call.1} parent=1 // pred_check
      _
    $region11: #{tpu_custom_call.1} parent=1 // pred_check_branch
      %21 = sbr.rel (0) target = $region13
    $region12: #{tpu_custom_call.1} parent=1 // pred_region
      _
    $region13: #{tpu_custom_call.1} parent=1 // pred_fallthru
      _
    // Predicated region
    $region14: #{tpu_custom_call.1} parent=1 // pred_check
      _
    $region15: #{tpu_custom_call.1} parent=1 // pred_check_branch
      %23 = sbr.rel (0) target = $region17
    $region16: #{tpu_custom_call.1} parent=1 // pred_region
      _
    $region17: #{tpu_custom_call.1} parent=1 // pred_fallthru
      _
    // Predicated region
    $region18: #{tpu_custom_call.1} parent=1 // pred_check
      _
    $region19: #{tpu_custom_call.1} parent=1 // pred_check_branch
      %25 = sbr.rel (0) target = $region21
    $region20: #{tpu_custom_call.1} parent=1 // pred_region
      _
    $region21: #{tpu_custom_call.1} parent=1 // pred_fallthru
      _
    // Predicated region
    $region22: #{tpu_custom_call.1} parent=1 // pred_check
      _
    $region23: #{tpu_custom_call.1} parent=1 // pred_check_branch
      %27 = sbr.rel (0) target = $region25
    $region24: #{tpu_custom_call.1} parent=1 // pred_region
      _
    $region25: #{tpu_custom_call.1} parent=1 // pred_fallthru
      _
    // Predicated region
    $region26: #{tpu_custom_call.1} parent=1 // pred_check
      _
    $region27: #{tpu_custom_call.1} parent=1 // pred_check_branch
      %29 = sbr.rel (0) target = $region29
    $region28: #{tpu_custom_call.1} parent=1 // pred_region
      _
    $region29: #{tpu_custom_call.1} parent=1 // pred_fallthru
      _
    // Predicated region
    $region30: #{tpu_custom_call.1} parent=1 // pred_check
      _
    $region31: #{tpu_custom_call.1} parent=1 // pred_check_branch
      %31 = sbr.rel (0) target = $region33
    $region32: #{tpu_custom_call.1} parent=1 // pred_region
      _
    $region33: #{tpu_custom_call.1} parent=1 // pred_fallthru
      _
    // Predicated region
    $region34: #{tpu_custom_call.1} parent=1 // pred_check
      _
    $region35: #{tpu_custom_call.1} parent=1 // pred_check_branch
      %33 = sbr.rel (0) target = $region37
    $region36: #{tpu_custom_call.1} parent=1 // pred_region
      _
    $region37: #{tpu_custom_call.1} parent=1 // pred_fallthru
      _
    // Predicated region
    $region38: #{tpu_custom_call.1} parent=1 // pred_check
      _
    $region39: #{tpu_custom_call.1} parent=1 // pred_check_branch
      %35 = sbr.rel (0) target = $region41
    $region40: #{tpu_custom_call.1} parent=1 // pred_region
      _
    $region41: #{tpu_custom_call.1} parent=1 // pred_fallthru
      _
    %v36 = vld [vmem:[%s9] sm:$0x1]
    %v37 = vlaneseq
    %v38 = vshrl.u32 %v37, 7
    %v39 = vsub.s32 0, %v38
    %v40 = vrot.slane %v36, %v39
    %v41 = vld [vmem:[%s9 + $0x1] sm:$0x1]
    %v42 = vlaneseq
    %v43 = vshrl.u32 %v42, 7
    %v44 = vsub.s32 0, %v43
    %v45 = vrot.slane %v41, %v44
    %v46 = vld [vmem:[%s9 + $0x2] sm:$0x1]
    %v47 = vlaneseq
    %v48 = vshrl.u32 %v47, 7
    %v49 = vsub.s32 0, %v48
    %v50 = vrot.slane %v46, %v49
    loop: start=0, step=1, limit=5
    $region42: #{tpu_custom_call.1} parent=1 // loop_pre_header
      _
    $region43: #{tpu_custom_call.1} parent=1 // loop_header
      %s52 = sphi 0, %s56
      %p53 = scmp.ge.s32.totalorder %s52, 5
    $region44: #{tpu_custom_call.1} parent=1 // loop_header_branch
      %55 = sbr.rel (%p53) target = $region48
    $region45: #{tpu_custom_call.1} parent=1 // loop_body
      %s57 = smul.u32 %s52, 8
      %s58 = scalar_lea.vmem %s0, %s57
      %v59 = vld [vmem:[%s58] sm:$0xff]
      %s60 = scalar_lea.vmem %s2, %s57
      %v61 = vld [vmem:[%s60] sm:$0xff]
      %s62 = scalar_lea.vmem %s1, %s57
      %v63 = vld [vmem:[%s62] sm:$0xff]
      %s64 = smul.u32 %s52, 4
      %s65 = scalar_lea.vmem %s3, %s64
      %v66 = vld [vmem:[%s65] sm:$0x7]
      %vm67 = vcmask 23552
      %v69 = vsel %vm67, %v63, 0
      %vm71 = vcmask 1042432
      %v73 = vsel %vm71, %v66, 0
      %75 = vmatprep.subr.mxu0 0.0
      %76 = vmatpush1.msra.mxu0 %v73
      %77 = vmatprep.subr.mxu0 0.0
      %78 = vmatpush1.msra.mxu0 0.0
      %79 = vmatprep.subr.mxu0 0.0
      %80 = vmatpush1.msra.mxu0 0.0
      %81 = vmatprep.subr.mxu0 0.0
      %82 = vmatpush1.msra.mxu0 0.0
      %83 = vmatprep.subr.mxu0 0.0
      %84 = vmatpush1.msra.mxu0 0.0
      %85 = vmatprep.subr.mxu0 0.0
      %86 = vmatpush1.msra.mxu0 0.0
      %87 = vmatprep.subr.mxu0 0.0
      %88 = vmatpush1.msra.mxu0 0.0
      %89 = vmatprep.subr.mxu0 0.0
      %90 = vmatpush1.msra.mxu0 0.0
      %91 = vmatprep.subr.mxu0 0.0
      %92 = vmatpush1.msra.mxu0 0.0
      %93 = vmatprep.subr.mxu0 0.0
      %94 = vmatpush1.msra.mxu0 0.0
      %95 = vmatprep.subr.mxu0 0.0
      %96 = vmatpush1.msra.mxu0 0.0
      %97 = vmatprep.subr.mxu0 0.0
      %98 = vmatpush1.msra.mxu0 0.0
      %99 = vmatprep.subr.mxu0 0.0
      %100 = vmatpush1.msra.mxu0 0.0
      %101 = vmatprep.subr.mxu0 0.0
      %102 = vmatpush1.msra.mxu0 0.0
      %103 = vmatprep.subr.mxu0 0.0
      %104 = vmatpush1.msra.mxu0 0.0
      %105 = vmatprep.subr.mxu0 0.0
      %106 = vmatpush1.msra.mxu0 0.0
      %107 = vmatprep.subr.mxu0 0.0
      %108 = vmatpush1.msra.mxu0 0.0
      %109 = vmatprep.subr.mxu0 0.0
      %110 = vmatpush1.msra.mxu0 0.0
      %111 = vmatprep.subr.mxu0 0.0
      %112 = vmatpush1.msra.mxu0 0.0
      %113 = vmatprep.subr.mxu0 0.0
      %114 = vmatpush1.msra.mxu0 0.0
      %115 = vmatprep.subr.mxu0 0.0
      %116 = vmatpush1.msra.mxu0 0.0
      %117 = vmatprep.subr.mxu0 0.0
      %118 = vmatpush1.msra.mxu0 0.0
      %119 = vmatprep.subr.mxu0 0.0
      %120 = vmatpush1.msra.mxu0 0.0
      %121 = vmatprep.subr.mxu0 0.0
      %122 = vmatpush1.msra.mxu0 0.0
      %123 = vmatprep.subr.mxu0 0.0
      %124 = vmatpush1.msra.mxu0 0.0
      %125 = vmatprep.subr.mxu0 0.0
      %126 = vmatpush1.msra.mxu0 0.0
      %127 = vmatprep.subr.mxu0 0.0
      %128 = vmatpush1.msra.mxu0 0.0
      %129 = vmatprep.subr.mxu0 0.0
      %130 = vmatpush1.msra.mxu0 0.0
      %131 = vmatprep.subr.mxu0 0.0
      %132 = vmatpush1.msra.mxu0 0.0
      %133 = vmatprep.subr.mxu0 0.0
      %134 = vmatpush1.msra.mxu0 0.0
      %135 = vmatprep.subr.mxu0 0.0
      %136 = vmatpush1.msra.mxu0 0.0
      %137 = vmatprep.subr.mxu0 0.0
      %138 = vmatpush1.msra.mxu0 0.0
      %139 = vmatprep.mubr.f32.mxu0 0.0
      %140 = vmatmul.mubr.f32.gmra.mrb[0].mxu0 %v69
      %v141 = vpop.f32.mrb[0].mxu0
      %v142 = vadd.f32 0.0, %v141
      %v143 = vpop.f32.mrb[0].mxu0
      %144 = vdwg.mxu0
      %vm145 = vcmask 64512
      %v147 = vsel %vm145, %v59, 0
      %149 = vmatprep.subr.mxu0 0.0
      %150 = vmatpush1.msra.mxu0 %v61
      %151 = vmatprep.subr.mxu0 0.0
      %152 = vmatpush1.msra.mxu0 0.0
      %153 = vmatprep.subr.mxu0 0.0
      %154 = vmatpush1.msra.mxu0 0.0
      %155 = vmatprep.subr.mxu0 0.0
      %156 = vmatpush1.msra.mxu0 0.0
      %157 = vmatprep.subr.mxu0 0.0
      %158 = vmatpush1.msra.mxu0 0.0
      %159 = vmatprep.subr.mxu0 0.0
      %160 = vmatpush1.msra.mxu0 0.0
      %161 = vmatprep.subr.mxu0 0.0
      %162 = vmatpush1.msra.mxu0 0.0
      %163 = vmatprep.subr.mxu0 0.0
      %164 = vmatpush1.msra.mxu0 0.0
      %165 = vmatprep.subr.mxu0 0.0
      %166 = vmatpush1.msra.mxu0 0.0
      %167 = vmatprep.subr.mxu0 0.0
      %168 = vmatpush1.msra.mxu0 0.0
      %169 = vmatprep.subr.mxu0 0.0
      %170 = vmatpush1.msra.mxu0 0.0
      %171 = vmatprep.subr.mxu0 0.0
      %172 = vmatpush1.msra.mxu0 0.0
      %173 = vmatprep.subr.mxu0 0.0
      %174 = vmatpush1.msra.mxu0 0.0
      %175 = vmatprep.subr.mxu0 0.0
      %176 = vmatpush1.msra.mxu0 0.0
      %177 = vmatprep.subr.mxu0 0.0
      %178 = vmatpush1.msra.mxu0 0.0
      %179 = vmatprep.subr.mxu0 0.0
      %180 = vmatpush1.msra.mxu0 0.0
      %181 = vmatprep.subr.mxu0 0.0
      %182 = vmatpush1.msra.mxu0 0.0
      %183 = vmatprep.subr.mxu0 0.0
      %184 = vmatpush1.msra.mxu0 0.0
      %185 = vmatprep.subr.mxu0 0.0
      %186 = vmatpush1.msra.mxu0 0.0
      %187 = vmatprep.subr.mxu0 0.0
      %188 = vmatpush1.msra.mxu0 0.0
      %189 = vmatprep.subr.mxu0 0.0
      %190 = vmatpush1.msra.mxu0 0.0
      %191 = vmatprep.subr.mxu0 0.0
      %192 = vmatpush1.msra.mxu0 0.0
      %193 = vmatprep.subr.mxu0 0.0
      %194 = vmatpush1.msra.mxu0 0.0
      %195 = vmatprep.subr.mxu0 0.0
      %196 = vmatpush1.msra.mxu0 0.0
      %197 = vmatprep.subr.mxu0 0.0
      %198 = vmatpush1.msra.mxu0 0.0
      %199 = vmatprep.subr.mxu0 0.0
      %200 = vmatpush1.msra.mxu0 0.0
      %201 = vmatprep.subr.mxu0 0.0
      %202 = vmatpush1.msra.mxu0 0.0
      %203 = vmatprep.subr.mxu0 0.0
      %204 = vmatpush1.msra.mxu0 0.0
      %205 = vmatprep.subr.mxu0 0.0
      %206 = vmatpush1.msra.mxu0 0.0
      %207 = vmatprep.subr.mxu0 0.0
      %208 = vmatpush1.msra.mxu0 0.0
      %209 = vmatprep.subr.mxu0 0.0
      %210 = vmatpush1.msra.mxu0 0.0
      %211 = vmatprep.subr.mxu0 0.0
      %212 = vmatpush1.msra.mxu0 0.0
      %213 = vmatprep.mubr.f32.mxu0 0.0
      %214 = vmatmul.mubr.f32.gmra.mrb[0].mxu0 %v147
      %v215 = vpop.f32.mrb[0].mxu0
      %v216 = vadd.f32 %v142, %v215
      %v217 = vpop.f32.mrb[0].mxu0
      %218 = vdwg.mxu0
      %s219 = scalar_lea.vmem %s4, %s52
      %v220 = vld [vmem:[%s219] sm:$0x1]
      %v222 = vlaneseq
      %v223 = vshrl.u32 %v222, 7
      %v224 = vsub.s32 0, %v223
      %v225 = vrot.slane %v220, %v224
      %v227 = vadd.f32 %v216, %v225
      %v228 = vxor.u32 %v227, 2147483648
      %v229 = vmul.f32 %v228, 1.442695
      %v230 = vpow.pop %v229
      %v231 = vadd.f32 %v230, 1.0
      %v232 = vrcp.pop %v231
      %v233 = vmul.f32 1.0, %v232
      %v234 = vmul.f32 %v227, %v233
      %s235 = smul.u32 %s52, 32
      %s236 = scalar_lea.vmem %s5, %s235
      %v237 = vld [vmem:[%s236] sm:$0xff]
      %v238 = vld [vmem:[%s236 + $0x8] sm:$0xff]
      %v239 = vld [vmem:[%s236 + $0x10] sm:$0xff]
      %v240 = vld [vmem:[%s236 + $0x18] sm:$0xff]
      %s241 = scalar_lea.vmem %s6, %s52
      %v242 = vld [vmem:[%s241] sm:$0x1]
      %v244 = vlaneseq
      %v245 = vshrl.u32 %v244, 7
      %v246 = vsub.s32 0, %v245
      %v247 = vrot.slane %v242, %v246
      %vm249 = vcmask 261120
      %v251 = vsel %vm249, %v234, 0
      %253 = vmatprep.subr.mxu0 0.0
      %254 = vmatpush1.msra.mxu0 %v237
      %255 = vmatprep.subr.mxu0 0.0
      %256 = vmatpush1.msra.mxu0 %v238
      %257 = vmatprep.subr.mxu0 0.0
      %258 = vmatpush1.msra.mxu0 %v239
      %259 = vmatprep.subr.mxu0 0.0
      %260 = vmatpush1.msra.mxu0 %v240
      %261 = vmatprep.subr.mxu0 0.0
      %262 = vmatpush1.msra.mxu0 0.0
      %263 = vmatprep.subr.mxu0 0.0
      %264 = vmatpush1.msra.mxu0 0.0
      %265 = vmatprep.subr.mxu0 0.0
      %266 = vmatpush1.msra.mxu0 0.0
      %267 = vmatprep.subr.mxu0 0.0
      %268 = vmatpush1.msra.mxu0 0.0
      %269 = vmatprep.subr.mxu0 0.0
      %270 = vmatpush1.msra.mxu0 0.0
      %271 = vmatprep.subr.mxu0 0.0
      %272 = vmatpush1.msra.mxu0 0.0
      %273 = vmatprep.subr.mxu0 0.0
      %274 = vmatpush1.msra.mxu0 0.0
      %275 = vmatprep.subr.mxu0 0.0
      %276 = vmatpush1.msra.mxu0 0.0
      %277 = vmatprep.subr.mxu0 0.0
      %278 = vmatpush1.msra.mxu0 0.0
      %279 = vmatprep.subr.mxu0 0.0
      %280 = vmatpush1.msra.mxu0 0.0
      %281 = vmatprep.subr.mxu0 0.0
      %282 = vmatpush1.msra.mxu0 0.0
      %283 = vmatprep.subr.mxu0 0.0
      %284 = vmatpush1.msra.mxu0 0.0
      %285 = vmatprep.subr.mxu0 0.0
      %286 = vmatpush1.msra.mxu0 0.0
      %287 = vmatprep.subr.mxu0 0.0
      %288 = vmatpush1.msra.mxu0 0.0
      %289 = vmatprep.subr.mxu0 0.0
      %290 = vmatpush1.msra.mxu0 0.0
      %291 = vmatprep.subr.mxu0 0.0
      %292 = vmatpush1.msra.mxu0 0.0
      %293 = vmatprep.subr.mxu0 0.0
      %294 = vmatpush1.msra.mxu0 0.0
      %295 = vmatprep.subr.mxu0 0.0
      %296 = vmatpush1.msra.mxu0 0.0
      %297 = vmatprep.subr.mxu0 0.0
      %298 = vmatpush1.msra.mxu0 0.0
      %299 = vmatprep.subr.mxu0 0.0
      %300 = vmatpush1.msra.mxu0 0.0
      %301 = vmatprep.subr.mxu0 0.0
      %302 = vmatpush1.msra.mxu0 0.0
      %303 = vmatprep.subr.mxu0 0.0
      %304 = vmatpush1.msra.mxu0 0.0
      %305 = vmatprep.subr.mxu0 0.0
      %306 = vmatpush1.msra.mxu0 0.0
      %307 = vmatprep.subr.mxu0 0.0
      %308 = vmatpush1.msra.mxu0 0.0
      %309 = vmatprep.subr.mxu0 0.0
      %310 = vmatpush1.msra.mxu0 0.0
      %311 = vmatprep.subr.mxu0 0.0
      %312 = vmatpush1.msra.mxu0 0.0
      %313 = vmatprep.subr.mxu0 0.0
      %314 = vmatpush1.msra.mxu0 0.0
      %315 = vmatprep.subr.mxu0 0.0
      %316 = vmatpush1.msra.mxu0 0.0
      %317 = vmatprep.mubr.f32.mxu0 0.0
      %318 = vmatmul.mubr.f32.gmra.mrb[0].mxu0 %v251
      %v319 = vpop.f32.mrb[0].mxu0
      %v320 = vadd.f32 %v247, %v319
      %v321 = vpop.f32.mrb[0].mxu0
      %322 = vdwg.mxu0
      %v323 = vxor.u32 %v320, 2147483648
      %v324 = vmul.f32 %v323, 1.442695
      %v325 = vpow.pop %v324
      %v326 = vadd.f32 %v325, 1.0
      %v327 = vrcp.pop %v326
      %v328 = vmul.f32 1.0, %v327
      %v329 = vmul.f32 %v320, %v328
      %s330 = scalar_lea.vmem %s7, %s235
      %v331 = vld [vmem:[%s330] sm:$0xff]
      %v332 = vld [vmem:[%s330 + $0x8] sm:$0xff]
      %v333 = vld [vmem:[%s330 + $0x10] sm:$0xff]
      %v334 = vld [vmem:[%s330 + $0x18] sm:$0xff]
      %s335 = scalar_lea.vmem %s8, %s52
      %v336 = vld [vmem:[%s335] sm:$0x1]
      %v338 = vlaneseq
      %v339 = vshrl.u32 %v338, 7
      %v340 = vsub.s32 0, %v339
      %v341 = vrot.slane %v336, %v340
      %v344 = vsel %vm249, %v329, 0
      %346 = vmatprep.subr.mxu0 0.0
      %347 = vmatpush1.msra.mxu0 %v331
      %348 = vmatprep.subr.mxu0 0.0
      %349 = vmatpush1.msra.mxu0 %v332
      %350 = vmatprep.subr.mxu0 0.0
      %351 = vmatpush1.msra.mxu0 %v333
      %352 = vmatprep.subr.mxu0 0.0
      %353 = vmatpush1.msra.mxu0 %v334
      %354 = vmatprep.subr.mxu0 0.0
      %355 = vmatpush1.msra.mxu0 0.0
      %356 = vmatprep.subr.mxu0 0.0
      %357 = vmatpush1.msra.mxu0 0.0
      %358 = vmatprep.subr.mxu0 0.0
      %359 = vmatpush1.msra.mxu0 0.0
      %360 = vmatprep.subr.mxu0 0.0
      %361 = vmatpush1.msra.mxu0 0.0
      %362 = vmatprep.subr.mxu0 0.0
      %363 = vmatpush1.msra.mxu0 0.0
      %364 = vmatprep.subr.mxu0 0.0
      %365 = vmatpush1.msra.mxu0 0.0
      %366 = vmatprep.subr.mxu0 0.0
      %367 = vmatpush1.msra.mxu0 0.0
      %368 = vmatprep.subr.mxu0 0.0
      %369 = vmatpush1.msra.mxu0 0.0
      %370 = vmatprep.subr.mxu0 0.0
      %371 = vmatpush1.msra.mxu0 0.0
      %372 = vmatprep.subr.mxu0 0.0
      %373 = vmatpush1.msra.mxu0 0.0
      %374 = vmatprep.subr.mxu0 0.0
      %375 = vmatpush1.msra.mxu0 0.0
      %376 = vmatprep.subr.mxu0 0.0
      %377 = vmatpush1.msra.mxu0 0.0
      %378 = vmatprep.subr.mxu0 0.0
      %379 = vmatpush1.msra.mxu0 0.0
      %380 = vmatprep.subr.mxu0 0.0
      %381 = vmatpush1.msra.mxu0 0.0
      %382 = vmatprep.subr.mxu0 0.0
      %383 = vmatpush1.msra.mxu0 0.0
      %384 = vmatprep.subr.mxu0 0.0
      %385 = vmatpush1.msra.mxu0 0.0
      %386 = vmatprep.subr.mxu0 0.0
      %387 = vmatpush1.msra.mxu0 0.0
      %388 = vmatprep.subr.mxu0 0.0
      %389 = vmatpush1.msra.mxu0 0.0
      %390 = vmatprep.subr.mxu0 0.0
      %391 = vmatpush1.msra.mxu0 0.0
      %392 = vmatprep.subr.mxu0 0.0
      %393 = vmatpush1.msra.mxu0 0.0
      %394 = vmatprep.subr.mxu0 0.0
      %395 = vmatpush1.msra.mxu0 0.0
      %396 = vmatprep.subr.mxu0 0.0
      %397 = vmatpush1.msra.mxu0 0.0
      %398 = vmatprep.subr.mxu0 0.0
      %399 = vmatpush1.msra.mxu0 0.0
      %400 = vmatprep.subr.mxu0 0.0
      %401 = vmatpush1.msra.mxu0 0.0
      %402 = vmatprep.subr.mxu0 0.0
      %403 = vmatpush1.msra.mxu0 0.0
      %404 = vmatprep.subr.mxu0 0.0
      %405 = vmatpush1.msra.mxu0 0.0
      %406 = vmatprep.subr.mxu0 0.0
      %407 = vmatpush1.msra.mxu0 0.0
      %408 = vmatprep.subr.mxu0 0.0
      %409 = vmatpush1.msra.mxu0 0.0
      %410 = vmatprep.mubr.f32.mxu0 0.0
      %411 = vmatmul.mubr.f32.gmra.mrb[0].mxu0 %v344
      %v412 = vpop.f32.mrb[0].mxu0
      %v413 = vadd.f32 %v341, %v412
      %v414 = vpop.f32.mrb[0].mxu0
      %415 = vdwg.mxu0
      %v416 = vsub.f32 %v40, %v413
      %v417 = vmax.f32 %v416, 0.0
      %vm418 = vcmp.ne.f32.partialorder %v416, %v416
      %v419 = vadd.f32 %v416, 0.0
      %v420 = vand.u32 2147483647, %v416
      %v421 = vsub.f32 0.0, %v420
      %v422 = vmul.f32 %v421, 1.442695
      %v423 = vpow.pop %v422
      %v424 = vadd.f32 %v423, 1.0
      %v425 = vlog2.pop %v424
      %v426 = vmul.f32 %v425, 0.6931472
      %v427 = vmul.f32 -0.5, %v423
      %v428 = vadd.f32 %v427, 1.0
      %v429 = vmul.f32 %v428, %v423
      %v430 = vand.u32 2147483647, %v423
      %vm431 = vcmp.lt.f32.partialorder %v430, 0.0004427343
      %v432 = vsel %vm431, %v429, %v426
      %v433 = vadd.f32 %v417, %v432
      %v434 = vsel %vm418, %v419, %v433
      %v435 = vsub.f32 %v40, %v434
      %v436 = vsub.f32 %v435, %v45
      %v437 = vmax.f32 %v436, 0.0
      %vm438 = vcmp.ne.f32.partialorder %v436, %v436
      %v439 = vadd.f32 %v436, 0.0
      %v440 = vand.u32 2147483647, %v436
      %v441 = vsub.f32 0.0, %v440
      %v442 = vmul.f32 %v441, 1.442695
      %v443 = vpow.pop %v442
      %v444 = vadd.f32 %v443, 1.0
      %v445 = vlog2.pop %v444
      %v446 = vmul.f32 %v445, 0.6931472
      %v447 = vmul.f32 -0.5, %v443
      %v448 = vadd.f32 %v447, 1.0
      %v449 = vmul.f32 %v448, %v443
      %v450 = vand.u32 2147483647, %v443
      %vm451 = vcmp.lt.f32.partialorder %v450, 0.0004427343
      %v452 = vsel %vm451, %v449, %v446
      %v453 = vadd.f32 %v437, %v452
      %v454 = vsel %vm438, %v439, %v453
      %v455 = vadd.f32 %v45, %v454
      %vm456 = vcmp.gt.f32.partialorder %v50, 0.0
      %v457 = vsel %vm456, %v455, %v413
      %s458 = scalar_lea.vmem [#allocation2], %s57
      %vm459 = vcmask 146432
      %460 = vst.msk [vmem:[%s458] sm:$0xff] %vm459, %v457
    $region46: #{tpu_custom_call.1} parent=1 // loop_footer
      %s56 = sadd.s32 1, %s52
    $region47: #{tpu_custom_call.1} parent=1 // loop_footer_branch
      %51 = sbr.rel target = $region43
    $region48: #{tpu_custom_call.1} parent=1 // loop_exit
      _
    // Predicated region
    $region49: #{tpu_custom_call.1} parent=1 // pred_check
      _
    $region50: #{tpu_custom_call.1} parent=1 // pred_check_branch
      %462 = sbr.rel (0) target = $region52
    $region51: #{tpu_custom_call.1} parent=1 // pred_region
      %s464 = ssub.s32 640, 640
      %465 = vsyncadd [#allocation3], %s464
      %s466 = sshll.u32 [#allocation2], 4
      %s467 = int_to_ptr.vmem [resolvable:$true] %s466
      %472 = dma.vmem_to_hbm [thread:$0]  %s467, 640, %s10, [#allocation3], 128, 128, 8
    $region52: #{tpu_custom_call.1} parent=1 // pred_fallthru
      _
    // Predicated region
    $region53: #{tpu_custom_call.1} parent=1 // pred_check
      _
    $region54: #{tpu_custom_call.1} parent=1 // pred_check_branch
      %474 = sbr.rel (0) target = $region56
    $region55: #{tpu_custom_call.1} parent=1 // pred_region
      %475 = dma.done [#allocation3], 640
    $region56: #{tpu_custom_call.1} parent=1 // pred_fallthru
      _
    %476 = vsyncpa [#allocation3], 1

// kernel: tpu_custom_call.1
$region0: #{tpu_custom_call.1}
  #allocation0 [shape = 'u32[]', space=smem, size = 0x4, offset = 0x4, fixed_abs, tag = 'smem constant byte address 0x4 - core index']
  #allocation1 [shape = 'u32[144,128]{1,0:T(1,128)}', space=vmem, size = 0x12000, scoped, tag = 'internal scratch']
  %s0 = inlined_call_operand.vmem [shape: f32[5,8,8], index: 0, kind: input, shape index: {}]
  %s1 = inlined_call_operand.vmem [shape: f32[5,8,3], index: 1, kind: input, shape index: {}]
  %s2 = inlined_call_operand.vmem [shape: f32[5,8,32], index: 2, kind: input, shape index: {}]
  %s3 = inlined_call_operand.vmem [shape: f32[5,3,32], index: 3, kind: input, shape index: {}]
  %s4 = inlined_call_operand.vmem [shape: f32[5,1,32], index: 4, kind: input, shape index: {}]
  %s5 = inlined_call_operand.vmem [shape: f32[5,32,32], index: 5, kind: input, shape index: {}]
  %s6 = inlined_call_operand.vmem [shape: f32[5,1,32], index: 6, kind: input, shape index: {}]
  %s7 = inlined_call_operand.vmem [shape: f32[5,32,18], index: 7, kind: input, shape index: {}]
  %s8 = inlined_call_operand.vmem [shape: f32[5,1,18], index: 8, kind: input, shape index: {}]
  %s9 = inlined_call_operand.vmem [shape: f32[3,18], index: 9, kind: input, shape index: {}]
  %s10 = inlined_call_operand.hbm [shape: f32[5,8,18], index: 10, kind: output, shape index: {}]
  %s11 = sld [smem:[#allocation0]]
  $region57: #{tpu_custom_call.1} parent=0
    _
  %s13 = ssub.s32 1, %s11
  %s14 = scalar_select 0, %s13, %s11
  $region1: #{tpu_custom_call.1} parent=0
    #allocation2 [shape = 'u8[20480]{0}', space=vmem, size = 0x5000, scoped, tag = 'output window, operand 0, single buffered']
    #allocation3 [shape = 's32[1]{0}', space=sflag, size = 0x4, scoped, tag = 'scoped memory for tpu_custom_call.1']
    %15 = vsyncpa [#allocation3], 0
    // Predicated region
    $region2: #{tpu_custom_call.1} parent=1 // pred_check
      _
    $region3: #{tpu_custom_call.1} parent=1 // pred_check_branch
      %17 = sbr.rel (0) target = $region5
    $region4: #{tpu_custom_call.1} parent=1 // pred_region
      _
    $region5: #{tpu_custom_call.1} parent=1 // pred_fallthru
      _
    // Predicated region
    $region6: #{tpu_custom_call.1} parent=1 // pred_check
      _
    $region7: #{tpu_custom_call.1} parent=1 // pred_check_branch
      %19 = sbr.rel (0) target = $region9
    $region8: #{tpu_custom_call.1} parent=1 // pred_region
      _
    $region9: #{tpu_custom_call.1} parent=1 // pred_fallthru
      _
    // Predicated region
    $region10: #{tpu_custom_call.1} parent=1 // pred_check
      _
    $region11: #{tpu_custom_call.1} parent=1 // pred_check_branch
      %21 = sbr.rel (0) target = $region13
    $region12: #{tpu_custom_call.1} parent=1 // pred_region
      _
    $region13: #{tpu_custom_call.1} parent=1 // pred_fallthru
      _
    // Predicated region
    $region14: #{tpu_custom_call.1} parent=1 // pred_check
      _
    $region15: #{tpu_custom_call.1} parent=1 // pred_check_branch
      %23 = sbr.rel (0) target = $region17
    $region16: #{tpu_custom_call.1} parent=1 // pred_region
      _
    $region17: #{tpu_custom_call.1} parent=1 // pred_fallthru
      _
    // Predicated region
    $region18: #{tpu_custom_call.1} parent=1 // pred_check
      _
    $region19: #{tpu_custom_call.1} parent=1 // pred_check_branch
      %25 = sbr.rel (0) target = $region21
    $region20: #{tpu_custom_call.1} parent=1 // pred_region
      _
    $region21: #{tpu_custom_call.1} parent=1 // pred_fallthru
      _
    // Predicated region
    $region22: #{tpu_custom_call.1} parent=1 // pred_check
      _
    $region23: #{tpu_custom_call.1} parent=1 // pred_check_branch
      %27 = sbr.rel (0) target = $region25
    $region24: #{tpu_custom_call.1} parent=1 // pred_region
      _
    $region25: #{tpu_custom_call.1} parent=1 // pred_fallthru
      _
    // Predicated region
    $region26: #{tpu_custom_call.1} parent=1 // pred_check
      _
    $region27: #{tpu_custom_call.1} parent=1 // pred_check_branch
      %29 = sbr.rel (0) target = $region29
    $region28: #{tpu_custom_call.1} parent=1 // pred_region
      _
    $region29: #{tpu_custom_call.1} parent=1 // pred_fallthru
      _
    // Predicated region
    $region30: #{tpu_custom_call.1} parent=1 // pred_check
      _
    $region31: #{tpu_custom_call.1} parent=1 // pred_check_branch
      %31 = sbr.rel (0) target = $region33
    $region32: #{tpu_custom_call.1} parent=1 // pred_region
      _
    $region33: #{tpu_custom_call.1} parent=1 // pred_fallthru
      _
    // Predicated region
    $region34: #{tpu_custom_call.1} parent=1 // pred_check
      _
    $region35: #{tpu_custom_call.1} parent=1 // pred_check_branch
      %33 = sbr.rel (0) target = $region37
    $region36: #{tpu_custom_call.1} parent=1 // pred_region
      _
    $region37: #{tpu_custom_call.1} parent=1 // pred_fallthru
      _
    // Predicated region
    $region38: #{tpu_custom_call.1} parent=1 // pred_check
      _
    $region39: #{tpu_custom_call.1} parent=1 // pred_check_branch
      %35 = sbr.rel (0) target = $region41
    $region40: #{tpu_custom_call.1} parent=1 // pred_region
      _
    $region41: #{tpu_custom_call.1} parent=1 // pred_fallthru
      _
    %v36 = vld [vmem:[%s9] sm:$0x1]
    %v37 = vlaneseq
    %v38 = vshrl.u32 %v37, 7
    %v39 = vsub.s32 0, %v38
    %v40 = vrot.slane %v36, %v39
    %v41 = vld [vmem:[%s9 + $0x1] sm:$0x1]
    %v42 = vlaneseq
    %v43 = vshrl.u32 %v42, 7
    %v44 = vsub.s32 0, %v43
    %v45 = vrot.slane %v41, %v44
    %v46 = vld [vmem:[%s9 + $0x2] sm:$0x1]
    %v47 = vlaneseq
    %v48 = vshrl.u32 %v47, 7
    %v49 = vsub.s32 0, %v48
    %v50 = vrot.slane %v46, %v49
    loop: start=0, step=1, limit=5
    $region42: #{tpu_custom_call.1} parent=1 // loop_pre_header
      _
    $region43: #{tpu_custom_call.1} parent=1 // loop_header
      %s52 = sphi 0, %s56
      %p53 = scmp.ge.s32.totalorder %s52, 5
    $region44: #{tpu_custom_call.1} parent=1 // loop_header_branch
      %55 = sbr.rel (%p53) target = $region48
    $region45: #{tpu_custom_call.1} parent=1 // loop_body
      %s57 = smul.u32 %s52, 8
      %s58 = scalar_lea.vmem %s0, %s57
      %v59 = vld [vmem:[%s58] sm:$0xff]
      %s60 = scalar_lea.vmem %s2, %s57
      %v61 = vld [vmem:[%s60] sm:$0xff]
      %s62 = scalar_lea.vmem %s1, %s57
      %v63 = vld [vmem:[%s62] sm:$0xff]
      %s64 = smul.u32 %s52, 4
      %s65 = scalar_lea.vmem %s3, %s64
      %v66 = vld [vmem:[%s65] sm:$0x7]
      %vm67 = vcmask 23552
      %v69 = vsel %vm67, %v63, 0
      %vm71 = vcmask 1042432
      %v73 = vsel %vm71, %v66, 0
      %75 = vmatprep.subr.mxu0 0.0
      %76 = vmatpush1.msra.mxu0 %v73
      %77 = vmatprep.subr.mxu0 0.0
      %78 = vmatpush1.msra.mxu0 0.0
      %79 = vmatprep.subr.mxu0 0.0
      %80 = vmatpush1.msra.mxu0 0.0
      %81 = vmatprep.subr.mxu0 0.0
      %82 = vmatpush1.msra.mxu0 0.0
      %83 = vmatprep.subr.mxu0 0.0
      %84 = vmatpush1.msra.mxu0 0.0
      %85 = vmatprep.subr.mxu0 0.0
      %86 = vmatpush1.msra.mxu0 0.0
      %87 = vmatprep.subr.mxu0 0.0
      %88 = vmatpush1.msra.mxu0 0.0
      %89 = vmatprep.subr.mxu0 0.0
      %90 = vmatpush1.msra.mxu0 0.0
      %91 = vmatprep.subr.mxu0 0.0
      %92 = vmatpush1.msra.mxu0 0.0
      %93 = vmatprep.subr.mxu0 0.0
      %94 = vmatpush1.msra.mxu0 0.0
      %95 = vmatprep.subr.mxu0 0.0
      %96 = vmatpush1.msra.mxu0 0.0
      %97 = vmatprep.subr.mxu0 0.0
      %98 = vmatpush1.msra.mxu0 0.0
      %99 = vmatprep.subr.mxu0 0.0
      %100 = vmatpush1.msra.mxu0 0.0
      %101 = vmatprep.subr.mxu0 0.0
      %102 = vmatpush1.msra.mxu0 0.0
      %103 = vmatprep.subr.mxu0 0.0
      %104 = vmatpush1.msra.mxu0 0.0
      %105 = vmatprep.subr.mxu0 0.0
      %106 = vmatpush1.msra.mxu0 0.0
      %107 = vmatprep.subr.mxu0 0.0
      %108 = vmatpush1.msra.mxu0 0.0
      %109 = vmatprep.subr.mxu0 0.0
      %110 = vmatpush1.msra.mxu0 0.0
      %111 = vmatprep.subr.mxu0 0.0
      %112 = vmatpush1.msra.mxu0 0.0
      %113 = vmatprep.subr.mxu0 0.0
      %114 = vmatpush1.msra.mxu0 0.0
      %115 = vmatprep.subr.mxu0 0.0
      %116 = vmatpush1.msra.mxu0 0.0
      %117 = vmatprep.subr.mxu0 0.0
      %118 = vmatpush1.msra.mxu0 0.0
      %119 = vmatprep.subr.mxu0 0.0
      %120 = vmatpush1.msra.mxu0 0.0
      %121 = vmatprep.subr.mxu0 0.0
      %122 = vmatpush1.msra.mxu0 0.0
      %123 = vmatprep.subr.mxu0 0.0
      %124 = vmatpush1.msra.mxu0 0.0
      %125 = vmatprep.subr.mxu0 0.0
      %126 = vmatpush1.msra.mxu0 0.0
      %127 = vmatprep.subr.mxu0 0.0
      %128 = vmatpush1.msra.mxu0 0.0
      %129 = vmatprep.subr.mxu0 0.0
      %130 = vmatpush1.msra.mxu0 0.0
      %131 = vmatprep.subr.mxu0 0.0
      %132 = vmatpush1.msra.mxu0 0.0
      %133 = vmatprep.subr.mxu0 0.0
      %134 = vmatpush1.msra.mxu0 0.0
      %135 = vmatprep.subr.mxu0 0.0
      %136 = vmatpush1.msra.mxu0 0.0
      %137 = vmatprep.subr.mxu0 0.0
      %138 = vmatpush1.msra.mxu0 0.0
      %139 = vmatprep.mubr.f32.mxu0 0.0
      %140 = vmatmul.mubr.f32.gmra.mrb[0].mxu0 %v69
      %v141 = vpop.f32.mrb[0].mxu0
      %v142 = vadd.f32 0.0, %v141
      %v143 = vpop.f32.mrb[0].mxu0
      %144 = vdwg.mxu0
      %vm145 = vcmask 64512
      %v147 = vsel %vm145, %v59, 0
      %149 = vmatprep.subr.mxu0 0.0
      %150 = vmatpush1.msra.mxu0 %v61
      %151 = vmatprep.subr.mxu0 0.0
      %152 = vmatpush1.msra.mxu0 0.0
      %153 = vmatprep.subr.mxu0 0.0
      %154 = vmatpush1.msra.mxu0 0.0
      %155 = vmatprep.subr.mxu0 0.0
      %156 = vmatpush1.msra.mxu0 0.0
      %157 = vmatprep.subr.mxu0 0.0
      %158 = vmatpush1.msra.mxu0 0.0
      %159 = vmatprep.subr.mxu0 0.0
      %160 = vmatpush1.msra.mxu0 0.0
      %161 = vmatprep.subr.mxu0 0.0
      %162 = vmatpush1.msra.mxu0 0.0
      %163 = vmatprep.subr.mxu0 0.0
      %164 = vmatpush1.msra.mxu0 0.0
      %165 = vmatprep.subr.mxu0 0.0
      %166 = vmatpush1.msra.mxu0 0.0
      %167 = vmatprep.subr.mxu0 0.0
      %168 = vmatpush1.msra.mxu0 0.0
      %169 = vmatprep.subr.mxu0 0.0
      %170 = vmatpush1.msra.mxu0 0.0
      %171 = vmatprep.subr.mxu0 0.0
      %172 = vmatpush1.msra.mxu0 0.0
      %173 = vmatprep.subr.mxu0 0.0
      %174 = vmatpush1.msra.mxu0 0.0
      %175 = vmatprep.subr.mxu0 0.0
      %176 = vmatpush1.msra.mxu0 0.0
      %177 = vmatprep.subr.mxu0 0.0
      %178 = vmatpush1.msra.mxu0 0.0
      %179 = vmatprep.subr.mxu0 0.0
      %180 = vmatpush1.msra.mxu0 0.0
      %181 = vmatprep.subr.mxu0 0.0
      %182 = vmatpush1.msra.mxu0 0.0
      %183 = vmatprep.subr.mxu0 0.0
      %184 = vmatpush1.msra.mxu0 0.0
      %185 = vmatprep.subr.mxu0 0.0
      %186 = vmatpush1.msra.mxu0 0.0
      %187 = vmatprep.subr.mxu0 0.0
      %188 = vmatpush1.msra.mxu0 0.0
      %189 = vmatprep.subr.mxu0 0.0
      %190 = vmatpush1.msra.mxu0 0.0
      %191 = vmatprep.subr.mxu0 0.0
      %192 = vmatpush1.msra.mxu0 0.0
      %193 = vmatprep.subr.mxu0 0.0
      %194 = vmatpush1.msra.mxu0 0.0
      %195 = vmatprep.subr.mxu0 0.0
      %196 = vmatpush1.msra.mxu0 0.0
      %197 = vmatprep.subr.mxu0 0.0
      %198 = vmatpush1.msra.mxu0 0.0
      %199 = vmatprep.subr.mxu0 0.0
      %200 = vmatpush1.msra.mxu0 0.0
      %201 = vmatprep.subr.mxu0 0.0
      %202 = vmatpush1.msra.mxu0 0.0
      %203 = vmatprep.subr.mxu0 0.0
      %204 = vmatpush1.msra.mxu0 0.0
      %205 = vmatprep.subr.mxu0 0.0
      %206 = vmatpush1.msra.mxu0 0.0
      %207 = vmatprep.subr.mxu0 0.0
      %208 = vmatpush1.msra.mxu0 0.0
      %209 = vmatprep.subr.mxu0 0.0
      %210 = vmatpush1.msra.mxu0 0.0
      %211 = vmatprep.subr.mxu0 0.0
      %212 = vmatpush1.msra.mxu0 0.0
      %213 = vmatprep.mubr.f32.mxu0 0.0
      %214 = vmatmul.mubr.f32.gmra.mrb[0].mxu0 %v147
      %v215 = vpop.f32.mrb[0].mxu0
      %v216 = vadd.f32 %v142, %v215
      %v217 = vpop.f32.mrb[0].mxu0
      %218 = vdwg.mxu0
      %s219 = scalar_lea.vmem %s4, %s52
      %v220 = vld [vmem:[%s219] sm:$0x1]
      %v222 = vlaneseq
      %v223 = vshrl.u32 %v222, 7
      %v224 = vsub.s32 0, %v223
      %v225 = vrot.slane %v220, %v224
      %v227 = vadd.f32 %v216, %v225
      %v228 = vxor.u32 %v227, 2147483648
      %v229 = vmul.f32 %v228, 1.442695
      %v230 = vpow.pop %v229
      %v231 = vadd.f32 %v230, 1.0
      %v232 = vrcp.pop %v231
      %v233 = vmul.f32 1.0, %v232
      %v234 = vmul.f32 %v227, %v233
      %s235 = smul.u32 %s52, 32
      %s236 = scalar_lea.vmem %s5, %s235
      %v237 = vld [vmem:[%s236] sm:$0xff]
      %v238 = vld [vmem:[%s236 + $0x8] sm:$0xff]
      %v239 = vld [vmem:[%s236 + $0x10] sm:$0xff]
      %v240 = vld [vmem:[%s236 + $0x18] sm:$0xff]
      %s241 = scalar_lea.vmem %s6, %s52
      %v242 = vld [vmem:[%s241] sm:$0x1]
      %v244 = vlaneseq
      %v245 = vshrl.u32 %v244, 7
      %v246 = vsub.s32 0, %v245
      %v247 = vrot.slane %v242, %v246
      %vm249 = vcmask 261120
      %v251 = vsel %vm249, %v234, 0
      %253 = vmatprep.subr.mxu0 0.0
      %254 = vmatpush1.msra.mxu0 %v237
      %255 = vmatprep.subr.mxu0 0.0
      %256 = vmatpush1.msra.mxu0 %v238
      %257 = vmatprep.subr.mxu0 0.0
      %258 = vmatpush1.msra.mxu0 %v239
      %259 = vmatprep.subr.mxu0 0.0
      %260 = vmatpush1.msra.mxu0 %v240
      %261 = vmatprep.subr.mxu0 0.0
      %262 = vmatpush1.msra.mxu0 0.0
      %263 = vmatprep.subr.mxu0 0.0
      %264 = vmatpush1.msra.mxu0 0.0
      %265 = vmatprep.subr.mxu0 0.0
      %266 = vmatpush1.msra.mxu0 0.0
      %267 = vmatprep.subr.mxu0 0.0
      %268 = vmatpush1.msra.mxu0 0.0
      %269 = vmatprep.subr.mxu0 0.0
      %270 = vmatpush1.msra.mxu0 0.0
      %271 = vmatprep.subr.mxu0 0.0
      %272 = vmatpush1.msra.mxu0 0.0
      %273 = vmatprep.subr.mxu0 0.0
      %274 = vmatpush1.msra.mxu0 0.0
      %275 = vmatprep.subr.mxu0 0.0
      %276 = vmatpush1.msra.mxu0 0.0
      %277 = vmatprep.subr.mxu0 0.0
      %278 = vmatpush1.msra.mxu0 0.0
      %279 = vmatprep.subr.mxu0 0.0
      %280 = vmatpush1.msra.mxu0 0.0
      %281 = vmatprep.subr.mxu0 0.0
      %282 = vmatpush1.msra.mxu0 0.0
      %283 = vmatprep.subr.mxu0 0.0
      %284 = vmatpush1.msra.mxu0 0.0
      %285 = vmatprep.subr.mxu0 0.0
      %286 = vmatpush1.msra.mxu0 0.0
      %287 = vmatprep.subr.mxu0 0.0
      %288 = vmatpush1.msra.mxu0 0.0
      %289 = vmatprep.subr.mxu0 0.0
      %290 = vmatpush1.msra.mxu0 0.0
      %291 = vmatprep.subr.mxu0 0.0
      %292 = vmatpush1.msra.mxu0 0.0
      %293 = vmatprep.subr.mxu0 0.0
      %294 = vmatpush1.msra.mxu0 0.0
      %295 = vmatprep.subr.mxu0 0.0
      %296 = vmatpush1.msra.mxu0 0.0
      %297 = vmatprep.subr.mxu0 0.0
      %298 = vmatpush1.msra.mxu0 0.0
      %299 = vmatprep.subr.mxu0 0.0
      %300 = vmatpush1.msra.mxu0 0.0
      %301 = vmatprep.subr.mxu0 0.0
      %302 = vmatpush1.msra.mxu0 0.0
      %303 = vmatprep.subr.mxu0 0.0
      %304 = vmatpush1.msra.mxu0 0.0
      %305 = vmatprep.subr.mxu0 0.0
      %306 = vmatpush1.msra.mxu0 0.0
      %307 = vmatprep.subr.mxu0 0.0
      %308 = vmatpush1.msra.mxu0 0.0
      %309 = vmatprep.subr.mxu0 0.0
      %310 = vmatpush1.msra.mxu0 0.0
      %311 = vmatprep.subr.mxu0 0.0
      %312 = vmatpush1.msra.mxu0 0.0
      %313 = vmatprep.subr.mxu0 0.0
      %314 = vmatpush1.msra.mxu0 0.0
      %315 = vmatprep.subr.mxu0 0.0
      %316 = vmatpush1.msra.mxu0 0.0
      %317 = vmatprep.mubr.f32.mxu0 0.0
      %318 = vmatmul.mubr.f32.gmra.mrb[0].mxu0 %v251
      %v319 = vpop.f32.mrb[0].mxu0
      %v320 = vadd.f32 %v247, %v319
      %v321 = vpop.f32.mrb[0].mxu0
      %322 = vdwg.mxu0
      %v323 = vxor.u32 %v320, 2147483648
      %v324 = vmul.f32 %v323, 1.442695
      %v325 = vpow.pop %v324
      %v326 = vadd.f32 %v325, 1.0
      %v327 = vrcp.pop %v326
      %v328 = vmul.f32 1.0, %v327
      %v329 = vmul.f32 %v320, %v328
      %s330 = scalar_lea.vmem %s7, %s235
      %v331 = vld [vmem:[%s330] sm:$0xff]
      %v332 = vld [vmem:[%s330 + $0x8] sm:$0xff]
      %v333 = vld [vmem:[%s330 + $0x10] sm:$0xff]
      %v334 = vld [vmem:[%s330 + $0x18] sm:$0xff]
      %s335 = scalar_lea.vmem %s8, %s52
      %v336 = vld [vmem:[%s335] sm:$0x1]
      %v338 = vlaneseq
      %v339 = vshrl.u32 %v338, 7
      %v340 = vsub.s32 0, %v339
      %v341 = vrot.slane %v336, %v340
      %v344 = vsel %vm249, %v329, 0
      %346 = vmatprep.subr.mxu0 0.0
      %347 = vmatpush1.msra.mxu0 %v331
      %348 = vmatprep.subr.mxu0 0.0
      %349 = vmatpush1.msra.mxu0 %v332
      %350 = vmatprep.subr.mxu0 0.0
      %351 = vmatpush1.msra.mxu0 %v333
      %352 = vmatprep.subr.mxu0 0.0
      %353 = vmatpush1.msra.mxu0 %v334
      %354 = vmatprep.subr.mxu0 0.0
      %355 = vmatpush1.msra.mxu0 0.0
      %356 = vmatprep.subr.mxu0 0.0
      %357 = vmatpush1.msra.mxu0 0.0
      %358 = vmatprep.subr.mxu0 0.0
      %359 = vmatpush1.msra.mxu0 0.0
      %360 = vmatprep.subr.mxu0 0.0
      %361 = vmatpush1.msra.mxu0 0.0
      %362 = vmatprep.subr.mxu0 0.0
      %363 = vmatpush1.msra.mxu0 0.0
      %364 = vmatprep.subr.mxu0 0.0
      %365 = vmatpush1.msra.mxu0 0.0
      %366 = vmatprep.subr.mxu0 0.0
      %367 = vmatpush1.msra.mxu0 0.0
      %368 = vmatprep.subr.mxu0 0.0
      %369 = vmatpush1.msra.mxu0 0.0
      %370 = vmatprep.subr.mxu0 0.0
      %371 = vmatpush1.msra.mxu0 0.0
      %372 = vmatprep.subr.mxu0 0.0
      %373 = vmatpush1.msra.mxu0 0.0
      %374 = vmatprep.subr.mxu0 0.0
      %375 = vmatpush1.msra.mxu0 0.0
      %376 = vmatprep.subr.mxu0 0.0
      %377 = vmatpush1.msra.mxu0 0.0
      %378 = vmatprep.subr.mxu0 0.0
      %379 = vmatpush1.msra.mxu0 0.0
      %380 = vmatprep.subr.mxu0 0.0
      %381 = vmatpush1.msra.mxu0 0.0
      %382 = vmatprep.subr.mxu0 0.0
      %383 = vmatpush1.msra.mxu0 0.0
      %384 = vmatprep.subr.mxu0 0.0
      %385 = vmatpush1.msra.mxu0 0.0
      %386 = vmatprep.subr.mxu0 0.0
      %387 = vmatpush1.msra.mxu0 0.0
      %388 = vmatprep.subr.mxu0 0.0
      %389 = vmatpush1.msra.mxu0 0.0
      %390 = vmatprep.subr.mxu0 0.0
      %391 = vmatpush1.msra.mxu0 0.0
      %392 = vmatprep.subr.mxu0 0.0
      %393 = vmatpush1.msra.mxu0 0.0
      %394 = vmatprep.subr.mxu0 0.0
      %395 = vmatpush1.msra.mxu0 0.0
      %396 = vmatprep.subr.mxu0 0.0
      %397 = vmatpush1.msra.mxu0 0.0
      %398 = vmatprep.subr.mxu0 0.0
      %399 = vmatpush1.msra.mxu0 0.0
      %400 = vmatprep.subr.mxu0 0.0
      %401 = vmatpush1.msra.mxu0 0.0
      %402 = vmatprep.subr.mxu0 0.0
      %403 = vmatpush1.msra.mxu0 0.0
      %404 = vmatprep.subr.mxu0 0.0
      %405 = vmatpush1.msra.mxu0 0.0
      %406 = vmatprep.subr.mxu0 0.0
      %407 = vmatpush1.msra.mxu0 0.0
      %408 = vmatprep.subr.mxu0 0.0
      %409 = vmatpush1.msra.mxu0 0.0
      %410 = vmatprep.mubr.f32.mxu0 0.0
      %411 = vmatmul.mubr.f32.gmra.mrb[0].mxu0 %v344
      %v412 = vpop.f32.mrb[0].mxu0
      %v413 = vadd.f32 %v341, %v412
      %v414 = vpop.f32.mrb[0].mxu0
      %415 = vdwg.mxu0
      %v416 = vsub.f32 %v40, %v413
      %v417 = vmax.f32 %v416, 0.0
      %vm418 = vcmp.ne.f32.partialorder %v416, %v416
      %v419 = vadd.f32 %v416, 0.0
      %v420 = vand.u32 2147483647, %v416
      %v421 = vsub.f32 0.0, %v420
      %v422 = vmul.f32 %v421, 1.442695
      %v423 = vpow.pop %v422
      %v424 = vadd.f32 %v423, 1.0
      %v425 = vlog2.pop %v424
      %v426 = vmul.f32 %v425, 0.6931472
      %v427 = vmul.f32 -0.5, %v423
      %v428 = vadd.f32 %v427, 1.0
      %v429 = vmul.f32 %v428, %v423
      %v430 = vand.u32 2147483647, %v423
      %vm431 = vcmp.lt.f32.partialorder %v430, 0.0004427343
      %v432 = vsel %vm431, %v429, %v426
      %v433 = vadd.f32 %v417, %v432
      %v434 = vsel %vm418, %v419, %v433
      %v435 = vsub.f32 %v40, %v434
      %v436 = vsub.f32 %v435, %v45
      %v437 = vmax.f32 %v436, 0.0
      %vm438 = vcmp.ne.f32.partialorder %v436, %v436
      %v439 = vadd.f32 %v436, 0.0
      %v440 = vand.u32 2147483647, %v436
      %v441 = vsub.f32 0.0, %v440
      %v442 = vmul.f32 %v441, 1.442695
      %v443 = vpow.pop %v442
      %v444 = vadd.f32 %v443, 1.0
      %v445 = vlog2.pop %v444
      %v446 = vmul.f32 %v445, 0.6931472
      %v447 = vmul.f32 -0.5, %v443
      %v448 = vadd.f32 %v447, 1.0
      %v449 = vmul.f32 %v448, %v443
      %v450 = vand.u32 2147483647, %v443
      %vm451 = vcmp.lt.f32.partialorder %v450, 0.0004427343
      %v452 = vsel %vm451, %v449, %v446
      %v453 = vadd.f32 %v437, %v452
      %v454 = vsel %vm438, %v439, %v453
      %v455 = vadd.f32 %v45, %v454
      %vm456 = vcmp.gt.f32.partialorder %v50, 0.0
      %v457 = vsel %vm456, %v455, %v413
      %s458 = scalar_lea.vmem [#allocation2], %s57
      %vm459 = vcmask 146432
      %460 = vst.msk [vmem:[%s458] sm:$0xff] %vm459, %v457
    $region46: #{tpu_custom_call.1} parent=1 // loop_footer
      %s56 = sadd.s32 1, %s52
    $region47: #{tpu_custom_call.1} parent=1 // loop_footer_branch
      %51 = sbr.rel target = $region43
    $region48: #{tpu_custom_call.1} parent=1 // loop_exit
      _
    // Predicated region
    $region49: #{tpu_custom_call.1} parent=1 // pred_check
      _
    $region50: #{tpu_custom_call.1} parent=1 // pred_check_branch
      %462 = sbr.rel (0) target = $region52
    $region51: #{tpu_custom_call.1} parent=1 // pred_region
      %s464 = ssub.s32 640, 640
      %465 = vsyncadd [#allocation3], %s464
      %s466 = sshll.u32 [#allocation2], 4
      %s467 = int_to_ptr.vmem [resolvable:$true] %s466
      %472 = dma.vmem_to_hbm [thread:$0]  %s467, 640, %s10, [#allocation3], 128, 128, 8
    $region52: #{tpu_custom_call.1} parent=1 // pred_fallthru
      _
    // Predicated region
    $region53: #{tpu_custom_call.1} parent=1 // pred_check
      _
    $region54: #{tpu_custom_call.1} parent=1 // pred_check_branch
      %474 = sbr.rel (0) target = $region56
    $region55: #{tpu_custom_call.1} parent=1 // pred_region
      %475 = dma.done [#allocation3], 640
    $region56: #{tpu_custom_call.1} parent=1 // pred_fallthru
      _
    %476 = vsyncpa [#allocation3], 1

</llo_original>
